<compile_context>
chip_gen: v5e
topology: v5e:2x2
jax: 0.10.0
libtpu: 0.0.40
codegen_flags: <defaults>
</compile_context>

<pallas_src>
import functools

import jax
import jax.numpy as jnp
import numpy as np
from jax.experimental import pallas as pl
from jax.experimental.pallas import tpu as pltpu


# ----------------------------------------------------------------------------
# Pallas kernel 1: out = relu?(x @ w + b)   (bf16 operands, f32 MXU accumulate)
# ----------------------------------------------------------------------------
def _matmul_bias_kernel(x_ref, w_ref, b_ref, o_ref, *, relu):
    acc = jnp.dot(x_ref[...], w_ref[...], preferred_element_type=jnp.float32)
    acc = acc + b_ref[...]                       # b_ref is (1, N) -> broadcasts
    if relu:
        acc = jnp.maximum(acc, 0.0)
    o_ref[...] = acc.astype(o_ref.dtype)


def _pick_block_m(m):
    # Largest M tile from the list that divides M and still yields >= 2 blocks
    # (so the grid can spread over v7x's 2 TensorCores and stays VMEM-bounded
    # at large batch); otherwise a single full-M block.
    for c in (512, 256, 128, 64):
        if m % c == 0 and m // c >= 2:
            return c
    return m


def matmul_bias(x, w, b2, *, relu):
    """x: [M, K] bf16, w: [K, N] bf16, b2: [1, N] f32 -> [M, N] f32."""
    M, K = x.shape
    K2, N = w.shape
    assert K == K2 and b2.shape == (1, N)
    bm = _pick_block_m(M)
    grid_m = M // bm
    bytes_accessed = (x.size * x.dtype.itemsize + w.size * w.dtype.itemsize
                      + b2.size * 4 + M * N * 4)
    return pl.pallas_call(
        functools.partial(_matmul_bias_kernel, relu=relu),
        out_shape=jax.ShapeDtypeStruct((M, N), jnp.float32),
        grid=(grid_m,),
        in_specs=[
            pl.BlockSpec((bm, K), lambda i: (i, 0)),
            pl.BlockSpec((K, N), lambda i: (0, 0)),
            pl.BlockSpec((1, N), lambda i: (0, 0)),
        ],
        out_specs=pl.BlockSpec((bm, N), lambda i: (i, 0)),
        compiler_params=pltpu.CompilerParams(
            dimension_semantics=("parallel",)),
        cost_estimate=pl.CostEstimate(
            flops=2 * M * N * K, transcendentals=0,
            bytes_accessed=int(bytes_accessed)),
    )(x, w, b2)


# ----------------------------------------------------------------------------
# Pallas kernel 2: fused tail  conv3(1x1 spatial) -> ReLU -> fc1 -> ReLU -> heads
# All weights live in VMEM for the single call; heads are one lane-dense GEMM.
# ----------------------------------------------------------------------------
def _fused_tail_kernel(x_ref, w3_ref, b3_ref, wf_ref, bf_ref, wh_ref, bh_ref,
                       o_ref):
    h = jnp.dot(x_ref[...], w3_ref[...], preferred_element_type=jnp.float32)
    h = jnp.maximum(h + b3_ref[...], 0.0)                       # conv3 + ReLU
    h = jnp.dot(h.astype(jnp.bfloat16), wf_ref[...],
                preferred_element_type=jnp.float32)
    h = jnp.maximum(h + bf_ref[...], 0.0)                       # fc1 + ReLU
    q = jnp.dot(h.astype(jnp.bfloat16), wh_ref[...],
                preferred_element_type=jnp.float32)
    o_ref[...] = (q + bh_ref[...]).astype(o_ref.dtype)          # all heads


def fused_tail(x2, w3, b3, wf, bf, wh, bh):
    B, K3 = x2.shape
    N = wh.shape[1]
    flops = 2 * B * (K3 * w3.shape[1] + wf.shape[0] * wf.shape[1]
                     + wh.shape[0] * N)
    bytes_accessed = sum(int(a.size) * a.dtype.itemsize
                         for a in (x2, w3, b3, wf, bf, wh, bh)) + B * N * 4
    return pl.pallas_call(
        _fused_tail_kernel,
        out_shape=jax.ShapeDtypeStruct((B, N), jnp.float32),
        grid=(1,),
        in_specs=[
            pl.BlockSpec(x2.shape, lambda i: (0, 0)),
            pl.BlockSpec(w3.shape, lambda i: (0, 0)),
            pl.BlockSpec(b3.shape, lambda i: (0, 0)),
            pl.BlockSpec(wf.shape, lambda i: (0, 0)),
            pl.BlockSpec(bf.shape, lambda i: (0, 0)),
            pl.BlockSpec(wh.shape, lambda i: (0, 0)),
            pl.BlockSpec(bh.shape, lambda i: (0, 0)),
        ],
        out_specs=pl.BlockSpec((B, N), lambda i: (0, 0)),
        compiler_params=pltpu.CompilerParams(
            dimension_semantics=("arbitrary",)),
        cost_estimate=pl.CostEstimate(
            flops=int(flops), transcendentals=0,
            bytes_accessed=int(bytes_accessed)),
    )(x2, w3, b3, wf, bf, wh, bh)


# ----------------------------------------------------------------------------
# im2col glue (pure JAX data movement, NHWC, patch order (KH, KW, C)).
# Compute stays in the Pallas kernels.
# ----------------------------------------------------------------------------
def im2col_nhwc(x, kh, kw, stride):
    B, H, W, C = x.shape
    oh = (H - kh) // stride + 1
    ow = (W - kw) // stride + 1
    assert oh >= 1 and ow >= 1, "input too small for this conv"
    cols = []
    for i in range(kh):
        for j in range(kw):
            cols.append(x[:, i:i + stride * oh:stride,
                          j:j + stride * ow:stride, :])
    patches = jnp.stack(cols, axis=3).reshape(B, oh, ow, kh, kw, C)
    return patches.reshape(B * oh * ow, kh * kw * C), oh, ow


def conv2d_relu_nhwc(x, wmat, b2, kh, kw, stride):
    """x NHWC, wmat [KH*KW*IC, OC] bf16, b2 (1, OC) f32 -> NHWC output, f32."""
    B = x.shape[0]
    oc = wmat.shape[1]
    cols, oh, ow = im2col_nhwc(x, kh, kw, stride)
    y = matmul_bias(cols.astype(jnp.bfloat16), wmat, b2, relu=True)
    return y.reshape(B, oh, ow, oc), oh, ow


# ----------------------------------------------------------------------------
# Parameter construction (deterministic, synthetic, PyTorch layout).
# ----------------------------------------------------------------------------
def _conv_out(s, k, st):
    return (s - k) // st + 1


def init_params(key, input_shape, num_actions):
    c_in, h, w = input_shape
    h1, w1 = _conv_out(h, 8, 4), _conv_out(w, 8, 4)
    h2, w2 = _conv_out(h1, 4, 2), _conv_out(w1, 4, 2)
    h3, w3 = _conv_out(h2, 3, 1), _conv_out(w2, 3, 1)
    flat_dim = 64 * h3 * w3

    keys = jax.random.split(key, 10)
    scale = 0.05
    params = {
        "conv1_w": jax.random.normal(keys[0], (32, c_in, 8, 8), jnp.float32) * scale,
        "conv1_b": jax.random.normal(keys[1], (32,), jnp.float32) * scale,
        "conv2_w": jax.random.normal(keys[2], (64, 32, 4, 4), jnp.float32) * scale,
        "conv2_b": jax.random.normal(keys[3], (64,), jnp.float32) * scale,
        "conv3_w": jax.random.normal(keys[4], (64, 64, 3, 3), jnp.float32) * scale,
        "conv3_b": jax.random.normal(keys[5], (64,), jnp.float32) * scale,
        "fc1_w": jax.random.normal(keys[6], (512, flat_dim), jnp.float32) * scale,
        "fc1_b": jax.random.normal(keys[7], (512,), jnp.float32) * scale,
        "fc2_ws": [],
        "fc2_bs": [],
    }
    hkeys = jax.random.split(keys[8], 2 * len(num_actions))
    for i, na in enumerate(num_actions):
        params["fc2_ws"].append(
            jax.random.normal(hkeys[2 * i], (na, 512), jnp.float32) * scale)
        params["fc2_bs"].append(
            jax.random.normal(hkeys[2 * i + 1], (na,), jnp.float32) * scale)
    return params


# ----------------------------------------------------------------------------
# One-time weight layout preparation (hoisted out of the forward).
# ----------------------------------------------------------------------------
def prepare_params(params, input_shape, num_actions):
    c_in, h, w = input_shape
    h1, w1 = _conv_out(h, 8, 4), _conv_out(w, 8, 4)
    h2, w2 = _conv_out(h1, 4, 2), _conv_out(w1, 4, 2)
    h3, w3 = _conv_out(h2, 3, 1), _conv_out(w2, 3, 1)
    flat_dim = 64 * h3 * w3
    fused = (h3 == 1 and w3 == 1)   # conv3 output is 1x1 -> fuse conv3+fc1+heads

    def conv_wmat(wt):
        # torch [OC, IC, KH, KW] -> im2col weight [KH*KW*IC, OC], (KH,KW,IC) rows
        oc, ic, kh, kw = wt.shape
        return jnp.transpose(wt, (2, 3, 1, 0)).reshape(kh * kw * ic, oc)

    prep = {
        "w1": conv_wmat(params["conv1_w"]).astype(jnp.bfloat16),
        "b1": params["conv1_b"].reshape(1, -1).astype(jnp.float32),
        "w2": conv_wmat(params["conv2_w"]).astype(jnp.bfloat16),
        "b2": params["conv2_b"].reshape(1, -1).astype(jnp.float32),
        "b3": params["conv3_b"].reshape(1, -1).astype(jnp.float32),
        "bf1": params["fc1_b"].reshape(1, -1).astype(jnp.float32),
    }

    w3m = conv_wmat(params["conv3_w"])                       # [KH*KW*IC, 64]
    if fused:
        k3 = w3m.shape[0]
        k3p = ((k3 + 127) // 128) * 128                      # pad K to 128-mult
        if k3p > k3:
            w3m = jnp.pad(w3m, ((0, k3p - k3), (0, 0)))
    prep["w3"] = w3m.astype(jnp.bfloat16)

    # fc1: reorder input columns from torch NCHW flatten to our NHWC flatten.
    fc1 = params["fc1_w"].reshape(512, 64, h3, w3).transpose(0, 2, 3, 1)
    prep["wf1"] = fc1.reshape(512, flat_dim).T.astype(jnp.bfloat16)

    # Heads: concat into one lane-dense [512, Npad] matmul; slice outside.
    tot = int(sum(num_actions))
    npad = ((tot + 127) // 128) * 128
    wh = jnp.concatenate([w.T for w in params["fc2_ws"]], axis=1)   # [512, tot]
    bh = jnp.concatenate(params["fc2_bs"])                          # [tot]
    prep["wh"] = jnp.pad(wh, ((0, 0), (0, npad - tot))).astype(jnp.bfloat16)
    prep["bh"] = jnp.pad(bh, (0, npad - tot)).reshape(1, -1).astype(jnp.float32)

    meta = dict(fused=fused, num_actions=tuple(int(n) for n in num_actions))
    return prep, meta


# ----------------------------------------------------------------------------
# Jitted forward (mirrors MultiDiscreteDQN.forward exactly).
# ----------------------------------------------------------------------------
def make_forward(meta):
    num_actions = meta["num_actions"]
    fused = meta["fused"]
    offs = [0] + list(np.cumsum(num_actions).astype(int))

    @jax.jit
    def forward(x_u8, prep):
        B = x_u8.shape[0]
        # NCHW uint8 -> NHWC f32 in [0, 1]  (x.float() / 255.0)
        x = jnp.transpose(x_u8, (0, 2, 3, 1)).astype(jnp.float32) / 255.0
        x, _, _ = conv2d_relu_nhwc(x, prep["w1"], prep["b1"], 8, 8, 4)
        x, h2, w2 = conv2d_relu_nhwc(x, prep["w2"], prep["b2"], 4, 4, 2)
        if fused:
            # conv3 output spatial is 1x1 -> its im2col row is exactly the full
            # NHWC conv2 output flattened in (KH, KW, C) order.
            x2 = x.reshape(B, h2 * w2 * 64)
            k3p = prep["w3"].shape[0]
            if k3p > x2.shape[1]:
                x2 = jnp.pad(x2, ((0, 0), (0, k3p - x2.shape[1])))
            q = fused_tail(x2.astype(jnp.bfloat16), prep["w3"], prep["b3"],
                           prep["wf1"], prep["bf1"], prep["wh"], prep["bh"])
        else:
            # General fallback (conv3 output larger than 1x1): separate kernels.
            x, h3, w3 = conv2d_relu_nhwc(x, prep["w3"], prep["b3"], 3, 3, 1)
            feat = x.reshape(B, h3 * w3 * 64)        # NHWC flatten (wf1 matches)
            feat = matmul_bias(feat.astype(jnp.bfloat16), prep["wf1"],
                               prep["bf1"], relu=True)
            q = matmul_bias(feat.astype(jnp.bfloat16), prep["wh"], prep["bh"],
                            relu=False)
        return tuple(q[:, offs[i]:offs[i + 1]] for i in range(len(num_actions)))

    return forward


if __name__ == "__main__":
    # Small Atari-style shapes: batch=2, 4 frames of 36x36 (conv stack -> 1x1x64).
    input_shape = (4, 36, 36)
    num_actions = [3, 5]
    batch = 2

    key = jax.random.PRNGKey(0)
    pkey, xkey = jax.random.split(key)
    params = init_params(pkey, input_shape, num_actions)
    prep, meta = prepare_params(params, input_shape, num_actions)
    forward = make_forward(meta)

    x = jax.random.randint(xkey, (batch,) + input_shape, 0, 256, dtype=jnp.int32)
    x = x.astype(jnp.uint8)

    outs = forward(x, prep)
    outs = [jax.block_until_ready(o) for o in outs]

    assert outs[0].shape == (batch, num_actions[0])
    assert outs[1].shape == (batch, num_actions[1])
    assert all(o.dtype == jnp.float32 for o in outs)
    print("KERNEL_OK")
</pallas_src>

<mosaic_0001>
module attributes {stable_mosaic.version = 11 : i64} {
  func.func @_matmul_bias_kernel(%arg0: i32, %arg1: memref<64x256xbf16, #tpu.memory_space<vmem>>, %arg2: memref<256x32xbf16, #tpu.memory_space<vmem>>, %arg3: memref<1x32xf32, #tpu.memory_space<vmem>>, %arg4: memref<64x32xf32, #tpu.memory_space<vmem>>) attributes {dimension_semantics = [#tpu.dimension_semantics<parallel>], iteration_bounds = array<i64: 2>, scalar_prefetch = 0 : i64, scratch_operands = 0 : i64, tpu.core_type = #tpu.core_type<tc>, window_params = [{transform_indices = @transform_0, window_bounds = array<i64: 64, 256>}, {pipeline_mode = #tpu.pipeline_mode<synchronous>, transform_indices = @transform_1, window_bounds = array<i64: 256, 32>}, {pipeline_mode = #tpu.pipeline_mode<synchronous>, transform_indices = @transform_2, window_bounds = array<i64: 1, 32>}, {transform_indices = @transform_3, window_bounds = array<i64: 64, 32>}]} {
    %c0 = arith.constant 0 : index
    %c0_0 = arith.constant 0 : index
    %0 = vector.load %arg1[%c0, %c0_0] : memref<64x256xbf16, #tpu.memory_space<vmem>>, vector<64x256xbf16>
    %c0_1 = arith.constant 0 : index
    %c0_2 = arith.constant 0 : index
    %1 = vector.load %arg2[%c0_1, %c0_2] : memref<256x32xbf16, #tpu.memory_space<vmem>>, vector<256x32xbf16>
    %cst = arith.constant dense<0.000000e+00> : vector<64x32xf32>
    %2 = tpu.matmul %0, %1, %cst {dimension_numbers = #tpu.dot_dimension_numbers<[1], [0], [0], [1], [0, 0, 1, 1], [], []>} : vector<64x256xbf16>, vector<256x32xbf16>, vector<64x32xf32> -> vector<64x32xf32>
    %c0_3 = arith.constant 0 : index
    %c0_4 = arith.constant 0 : index
    %3 = vector.load %arg3[%c0_3, %c0_4] : memref<1x32xf32, #tpu.memory_space<vmem>>, vector<1x32xf32>
    %4 = vector.broadcast %3 : vector<1x32xf32> to vector<64x32xf32>
    %5 = arith.addf %2, %4 : vector<64x32xf32>
    %cst_5 = arith.constant 0.000000e+00 : f32
    %6 = vector.broadcast %cst_5 : f32 to vector<64x32xf32>
    %7 = arith.maximumf %5, %6 : vector<64x32xf32>
    %c0_6 = arith.constant 0 : index
    %c0_7 = arith.constant 0 : index
    %8 = vector.load %arg4[%c0_6, %c0_7] : memref<64x32xf32, #tpu.memory_space<vmem>>, vector<64x32xf32>
    tpu.vector_store %arg4[%c0_6, %c0_7], %7 {strides = array<i32>} : memref<64x32xf32, #tpu.memory_space<vmem>>, vector<64x32xf32>,
    return
  }
  func.func @transform_0(%arg0: i32) -> (i32, i32) {
    %c0_i32 = arith.constant 0 : i32
    %c0_i32_0 = arith.constant 0 : i32
    return %arg0, %c0_i32 : i32, i32
  }
  func.func @transform_1(%arg0: i32) -> (i32, i32) {
    %c0_i32 = arith.constant 0 : i32
    %c0_i32_0 = arith.constant 0 : i32
    %c0_i32_1 = arith.constant 0 : i32
    return %c0_i32, %c0_i32_0 : i32, i32
  }
  func.func @transform_2(%arg0: i32) -> (i32, i32) {
    %c0_i32 = arith.constant 0 : i32
    %c0_i32_0 = arith.constant 0 : i32
    %c0_i32_1 = arith.constant 0 : i32
    return %c0_i32, %c0_i32_0 : i32, i32
  }
  func.func @transform_3(%arg0: i32) -> (i32, i32) {
    %c0_i32 = arith.constant 0 : i32
    %c0_i32_0 = arith.constant 0 : i32
    return %arg0, %c0_i32 : i32, i32
  }
}

module attributes {stable_mosaic.version = 11 : i64} {
  func.func @_matmul_bias_kernel(%arg0: i32, %arg1: memref<18x512xbf16, #tpu.memory_space<vmem>>, %arg2: memref<512x64xbf16, #tpu.memory_space<vmem>>, %arg3: memref<1x64xf32, #tpu.memory_space<vmem>>, %arg4: memref<18x64xf32, #tpu.memory_space<vmem>>) attributes {dimension_semantics = [#tpu.dimension_semantics<parallel>], iteration_bounds = array<i64: 1>, scalar_prefetch = 0 : i64, scratch_operands = 0 : i64, tpu.core_type = #tpu.core_type<tc>, window_params = [{transform_indices = @transform_0, window_bounds = array<i64: 18, 512>}, {pipeline_mode = #tpu.pipeline_mode<synchronous>, transform_indices = @transform_1, window_bounds = array<i64: 512, 64>}, {pipeline_mode = #tpu.pipeline_mode<synchronous>, transform_indices = @transform_2, window_bounds = array<i64: 1, 64>}, {transform_indices = @transform_3, window_bounds = array<i64: 18, 64>}]} {
    %c0 = arith.constant 0 : index
    %c0_0 = arith.constant 0 : index
    %0 = vector.load %arg1[%c0, %c0_0] : memref<18x512xbf16, #tpu.memory_space<vmem>>, vector<18x512xbf16>
    %c0_1 = arith.constant 0 : index
    %c0_2 = arith.constant 0 : index
    %1 = vector.load %arg2[%c0_1, %c0_2] : memref<512x64xbf16, #tpu.memory_space<vmem>>, vector<512x64xbf16>
    %cst = arith.constant dense<0.000000e+00> : vector<18x64xf32>
    %2 = tpu.matmul %0, %1, %cst {dimension_numbers = #tpu.dot_dimension_numbers<[1], [0], [0], [1], [0, 0, 1, 1], [], []>} : vector<18x512xbf16>, vector<512x64xbf16>, vector<18x64xf32> -> vector<18x64xf32>
    %c0_3 = arith.constant 0 : index
    %c0_4 = arith.constant 0 : index
    %3 = vector.load %arg3[%c0_3, %c0_4] : memref<1x64xf32, #tpu.memory_space<vmem>>, vector<1x64xf32>
    %4 = vector.broadcast %3 : vector<1x64xf32> to vector<18x64xf32>
    %5 = arith.addf %2, %4 : vector<18x64xf32>
    %cst_5 = arith.constant 0.000000e+00 : f32
    %6 = vector.broadcast %cst_5 : f32 to vector<18x64xf32>
    %7 = arith.maximumf %5, %6 : vector<18x64xf32>
    %c0_6 = arith.constant 0 : index
    %c0_7 = arith.constant 0 : index
    %8 = vector.load %arg4[%c0_6, %c0_7] : memref<18x64xf32, #tpu.memory_space<vmem>>, vector<18x64xf32>
    tpu.vector_store %arg4[%c0_6, %c0_7], %7 {strides = array<i32>} : memref<18x64xf32, #tpu.memory_space<vmem>>, vector<18x64xf32>,
    return
  }
  func.func @transform_0(%arg0: i32) -> (i32, i32) {
    %c0_i32 = arith.constant 0 : i32
    %c0_i32_0 = arith.constant 0 : i32
    return %arg0, %c0_i32 : i32, i32
  }
  func.func @transform_1(%arg0: i32) -> (i32, i32) {
    %c0_i32 = arith.constant 0 : i32
    %c0_i32_0 = arith.constant 0 : i32
    %c0_i32_1 = arith.constant 0 : i32
    return %c0_i32, %c0_i32_0 : i32, i32
  }
  func.func @transform_2(%arg0: i32) -> (i32, i32) {
    %c0_i32 = arith.constant 0 : i32
    %c0_i32_0 = arith.constant 0 : i32
    %c0_i32_1 = arith.constant 0 : i32
    return %c0_i32, %c0_i32_0 : i32, i32
  }
  func.func @transform_3(%arg0: i32) -> (i32, i32) {
    %c0_i32 = arith.constant 0 : i32
    %c0_i32_0 = arith.constant 0 : i32
    return %arg0, %c0_i32 : i32, i32
  }
}

module attributes {stable_mosaic.version = 11 : i64} {
  func.func @_fused_tail_kernel(%arg0: i32, %arg1: memref<2x640xbf16, #tpu.memory_space<vmem>>, %arg2: memref<640x64xbf16, #tpu.memory_space<vmem>>, %arg3: memref<1x64xf32, #tpu.memory_space<vmem>>, %arg4: memref<64x512xbf16, #tpu.memory_space<vmem>>, %arg5: memref<1x512xf32, #tpu.memory_space<vmem>>, %arg6: memref<512x128xbf16, #tpu.memory_space<vmem>>, %arg7: memref<1x128xf32, #tpu.memory_space<vmem>>, %arg8: memref<2x128xf32, #tpu.memory_space<vmem>>) attributes {dimension_semantics = [#tpu.dimension_semantics<arbitrary>], iteration_bounds = array<i64: 1>, scalar_prefetch = 0 : i64, scratch_operands = 0 : i64, tpu.core_type = #tpu.core_type<tc>, window_params = [{pipeline_mode = #tpu.pipeline_mode<synchronous>, transform_indices = @transform_0, window_bounds = array<i64: 2, 640>}, {pipeline_mode = #tpu.pipeline_mode<synchronous>, transform_indices = @transform_1, window_bounds = array<i64: 640, 64>}, {pipeline_mode = #tpu.pipeline_mode<synchronous>, transform_indices = @transform_2, window_bounds = array<i64: 1, 64>}, {pipeline_mode = #tpu.pipeline_mode<synchronous>, transform_indices = @transform_3, window_bounds = array<i64: 64, 512>}, {pipeline_mode = #tpu.pipeline_mode<synchronous>, transform_indices = @transform_4, window_bounds = array<i64: 1, 512>}, {pipeline_mode = #tpu.pipeline_mode<synchronous>, transform_indices = @transform_5, window_bounds = array<i64: 512, 128>}, {pipeline_mode = #tpu.pipeline_mode<synchronous>, transform_indices = @transform_6, window_bounds = array<i64: 1, 128>}, {pipeline_mode = #tpu.pipeline_mode<synchronous>, transform_indices = @transform_7, window_bounds = array<i64: 2, 128>}]} {
    %c0 = arith.constant 0 : index
    %c0_0 = arith.constant 0 : index
    %0 = vector.load %arg1[%c0, %c0_0] : memref<2x640xbf16, #tpu.memory_space<vmem>>, vector<2x640xbf16>
    %c0_1 = arith.constant 0 : index
    %c0_2 = arith.constant 0 : index
    %1 = vector.load %arg2[%c0_1, %c0_2] : memref<640x64xbf16, #tpu.memory_space<vmem>>, vector<640x64xbf16>
    %cst = arith.constant dense<0.000000e+00> : vector<2x64xf32>
    %2 = tpu.matmul %0, %1, %cst {dimension_numbers = #tpu.dot_dimension_numbers<[1], [0], [0], [1], [0, 0, 1, 1], [], []>} : vector<2x640xbf16>, vector<640x64xbf16>, vector<2x64xf32> -> vector<2x64xf32>
    %c0_3 = arith.constant 0 : index
    %c0_4 = arith.constant 0 : index
    %3 = vector.load %arg3[%c0_3, %c0_4] : memref<1x64xf32, #tpu.memory_space<vmem>>, vector<1x64xf32>
    %4 = vector.broadcast %3 : vector<1x64xf32> to vector<2x64xf32>
    %5 = arith.addf %2, %4 : vector<2x64xf32>
    %cst_5 = arith.constant 0.000000e+00 : f32
    %6 = vector.broadcast %cst_5 : f32 to vector<2x64xf32>
    %7 = arith.maximumf %5, %6 : vector<2x64xf32>
    %8 = arith.truncf %7 : vector<2x64xf32> to vector<2x64xbf16>
    %c0_6 = arith.constant 0 : index
    %c0_7 = arith.constant 0 : index
    %9 = vector.load %arg4[%c0_6, %c0_7] : memref<64x512xbf16, #tpu.memory_space<vmem>>, vector<64x512xbf16>
    %cst_8 = arith.constant dense<0.000000e+00> : vector<2x512xf32>
    %10 = tpu.matmul %8, %9, %cst_8 {dimension_numbers = #tpu.dot_dimension_numbers<[1], [0], [0], [1], [0, 0, 1, 1], [], []>} : vector<2x64xbf16>, vector<64x512xbf16>, vector<2x512xf32> -> vector<2x512xf32>
    %c0_9 = arith.constant 0 : index
    %c0_10 = arith.constant 0 : index
    %11 = vector.load %arg5[%c0_9, %c0_10] : memref<1x512xf32, #tpu.memory_space<vmem>>, vector<1x512xf32>
    %12 = vector.broadcast %11 : vector<1x512xf32> to vector<2x512xf32>
    %13 = arith.addf %10, %12 : vector<2x512xf32>
    %cst_11 = arith.constant 0.000000e+00 : f32
    %14 = vector.broadcast %cst_11 : f32 to vector<2x512xf32>
    %15 = arith.maximumf %13, %14 : vector<2x512xf32>
    %16 = arith.truncf %15 : vector<2x512xf32> to vector<2x512xbf16>
    %c0_12 = arith.constant 0 : index
    %c0_13 = arith.constant 0 : index
    %17 = vector.load %arg6[%c0_12, %c0_13] : memref<512x128xbf16, #tpu.memory_space<vmem>>, vector<512x128xbf16>
    %cst_14 = arith.constant dense<0.000000e+00> : vector<2x128xf32>
    %18 = tpu.matmul %16, %17, %cst_14 {dimension_numbers = #tpu.dot_dimension_numbers<[1], [0], [0], [1], [0, 0, 1, 1], [], []>} : vector<2x512xbf16>, vector<512x128xbf16>, vector<2x128xf32> -> vector<2x128xf32>
    %c0_15 = arith.constant 0 : index
    %c0_16 = arith.constant 0 : index
    %19 = vector.load %arg7[%c0_15, %c0_16] : memref<1x128xf32, #tpu.memory_space<vmem>>, vector<1x128xf32>
    %20 = vector.broadcast %19 : vector<1x128xf32> to vector<2x128xf32>
    %21 = arith.addf %18, %20 : vector<2x128xf32>
    %c0_17 = arith.constant 0 : index
    %c0_18 = arith.constant 0 : index
    %22 = vector.load %arg8[%c0_17, %c0_18] : memref<2x128xf32, #tpu.memory_space<vmem>>, vector<2x128xf32>
    tpu.vector_store %arg8[%c0_17, %c0_18], %21 {strides = array<i32>} : memref<2x128xf32, #tpu.memory_space<vmem>>, vector<2x128xf32>,
    return
  }
  func.func @transform_0(%arg0: i32) -> (i32, i32) {
    %c0_i32 = arith.constant 0 : i32
    %c0_i32_0 = arith.constant 0 : i32
    %c0_i32_1 = arith.constant 0 : i32
    return %c0_i32, %c0_i32_0 : i32, i32
  }
  func.func @transform_1(%arg0: i32) -> (i32, i32) {
    %c0_i32 = arith.constant 0 : i32
    %c0_i32_0 = arith.constant 0 : i32
    %c0_i32_1 = arith.constant 0 : i32
    return %c0_i32, %c0_i32_0 : i32, i32
  }
  func.func @transform_2(%arg0: i32) -> (i32, i32) {
    %c0_i32 = arith.constant 0 : i32
    %c0_i32_0 = arith.constant 0 : i32
    %c0_i32_1 = arith.constant 0 : i32
    return %c0_i32, %c0_i32_0 : i32, i32
  }
  func.func @transform_3(%arg0: i32) -> (i32, i32) {
    %c0_i32 = arith.constant 0 : i32
    %c0_i32_0 = arith.constant 0 : i32
    %c0_i32_1 = arith.constant 0 : i32
    return %c0_i32, %c0_i32_0 : i32, i32
  }
  func.func @transform_4(%arg0: i32) -> (i32, i32) {
    %c0_i32 = arith.constant 0 : i32
    %c0_i32_0 = arith.constant 0 : i32
    %c0_i32_1 = arith.constant 0 : i32
    return %c0_i32, %c0_i32_0 : i32, i32
  }
  func.func @transform_5(%arg0: i32) -> (i32, i32) {
    %c0_i32 = arith.constant 0 : i32
    %c0_i32_0 = arith.constant 0 : i32
    %c0_i32_1 = arith.constant 0 : i32
    return %c0_i32, %c0_i32_0 : i32, i32
  }
  func.func @transform_6(%arg0: i32) -> (i32, i32) {
    %c0_i32 = arith.constant 0 : i32
    %c0_i32_0 = arith.constant 0 : i32
    %c0_i32_1 = arith.constant 0 : i32
    return %c0_i32, %c0_i32_0 : i32, i32
  }
  func.func @transform_7(%arg0: i32) -> (i32, i32) {
    %c0_i32 = arith.constant 0 : i32
    %c0_i32_0 = arith.constant 0 : i32
    %c0_i32_1 = arith.constant 0 : i32
    return %c0_i32, %c0_i32_0 : i32, i32
  }
}

</mosaic_0001>

<llo_original>
// kernel: forward.3
$region0: #{forward.3}
  #allocation0 [shape = 'u32[]', space=smem, size = 0x4, offset = 0x4, fixed_abs, tag = 'smem constant byte address 0x4 - core index']
  #allocation1 [shape = 'u32[72,128]{1,0:T(1,128)}', space=vmem, size = 0x9000, scoped, tag = 'internal scratch']
  %s0 = inlined_call_operand.vmem [shape: bf16[128,256], index: 0, kind: input, shape index: {}]
  %s1 = inlined_call_operand.vmem [shape: bf16[256,32], index: 1, kind: input, shape index: {}]
  %s2 = inlined_call_operand.vmem [shape: f32[1,32], index: 2, kind: input, shape index: {}]
  %s3 = inlined_call_operand.vmem [shape: f32[128,32], index: 3, kind: output, shape index: {}]
  %s4 = sld [smem:[#allocation0]]
  $region45: #{forward.3} parent=0
    _
  %s6 = ssub.s32 1, %s4
  %s7 = scalar_select 0, %s6, %s4
  loop: start=0, step=1, limit=4
  $region2: #{forward.3} parent=0 // loop_pre_header
    _
  $region3: #{forward.3} parent=0 // loop_header
    %s9 = sphi 0, %s13
    %p10 = scmp.ge.s32.totalorder %s9, 4
    %s19 = sphi 0, %s21
    %s22 = sphi 0, %s19
    %s23 = sphi 0, %s22
    %s39 = sphi 0, %s23
    %s43 = sphi 0, %s43
    %s45 = sphi 0, %s43
    %s46 = sphi 0, %s45
    %s60 = sphi 0, %s46
    %s64 = sphi 0, %s64
    %s66 = sphi 0, %s64
    %s67 = sphi 0, %s66
    %s81 = sphi 0, %s67
    %s87 = sphi 0, %s89
    %s90 = sphi 0, %s87
    %s91 = sphi 0, %s90
    %s107 = sphi 0, %s91
  $region4: #{forward.3} parent=0 // loop_header_branch
    %12 = sbr.rel (%p10) target = $region8
  $region5: #{forward.3} parent=0 // loop_body
    %s14 = ssub.s32 %s9, 1
    %s15 = ssub.s32 %s9, 2
    %s16 = sadd.s32 %s9, 1
    %s17 = ssub.s32 %s9, %s16
    %p18 = scmp.eq.s32.totalorder %s17, 0
    %s20 = sadd.s32 %s19, 1
    %s21 = scalar_select %p18, %s19, %s20
    %p24 = pneg %p18
    %p25 = scmp.eq.s32.totalorder %s9, 1
    %p26 = por %p24, %p25
    %p27 = scmp.ne.s32.totalorder %s19, %s22
    %p28 = scmp.eq.s32.totalorder %s9, 0
    %p29 = por %p27, %p28
    %p30 = scmp.ne.s32.totalorder %s19, %s22
    %p31 = scmp.eq.s32.totalorder %s14, 1
    %p32 = por %p30, %p31
    %p33 = scmp.ne.s32.totalorder %s22, %s23
    %p34 = scmp.eq.s32.totalorder %s14, 0
    %p35 = por %p33, %p34
    %p36 = scmp.ne.s32.totalorder %s22, %s23
    %p37 = scmp.eq.s32.totalorder %s15, 1
    %p38 = por %p36, %p37
    %p40 = scmp.ne.s32.totalorder %s23, %s39
    %p41 = scmp.eq.s32.totalorder %s15, 0
    %p42 = por %p40, %p41
    %s44 = sadd.s32 %s43, 1
    %p47 = scmp.eq.s32.totalorder %s9, 1
    %p48 = scmp.ne.s32.totalorder %s43, %s45
    %p49 = scmp.eq.s32.totalorder %s9, 0
    %p50 = por %p48, %p49
    %p51 = scmp.ne.s32.totalorder %s43, %s45
    %p52 = scmp.eq.s32.totalorder %s14, 1
    %p53 = por %p51, %p52
    %p54 = scmp.ne.s32.totalorder %s45, %s46
    %p55 = scmp.eq.s32.totalorder %s14, 0
    %p56 = por %p54, %p55
    %p57 = scmp.ne.s32.totalorder %s45, %s46
    %p58 = scmp.eq.s32.totalorder %s15, 1
    %p59 = por %p57, %p58
    %p61 = scmp.ne.s32.totalorder %s46, %s60
    %p62 = scmp.eq.s32.totalorder %s15, 0
    %p63 = por %p61, %p62
    %s65 = sadd.s32 %s64, 1
    %p68 = scmp.eq.s32.totalorder %s9, 1
    %p69 = scmp.ne.s32.totalorder %s64, %s66
    %p70 = scmp.eq.s32.totalorder %s9, 0
    %p71 = por %p69, %p70
    %p72 = scmp.ne.s32.totalorder %s64, %s66
    %p73 = scmp.eq.s32.totalorder %s14, 1
    %p74 = por %p72, %p73
    %p75 = scmp.ne.s32.totalorder %s66, %s67
    %p76 = scmp.eq.s32.totalorder %s14, 0
    %p77 = por %p75, %p76
    %p78 = scmp.ne.s32.totalorder %s66, %s67
    %p79 = scmp.eq.s32.totalorder %s15, 1
    %p80 = por %p78, %p79
    %p82 = scmp.ne.s32.totalorder %s67, %s81
    %p83 = scmp.eq.s32.totalorder %s15, 0
    %p84 = por %p82, %p83
    %s85 = ssub.s32 %s9, %s16
    %p86 = scmp.eq.s32.totalorder %s85, 0
    %s88 = sadd.s32 %s87, 1
    %s89 = scalar_select %p86, %s87, %s88
    %p92 = pneg %p86
    %p93 = scmp.eq.s32.totalorder %s9, 1
    %p94 = por %p92, %p93
    %p95 = scmp.ne.s32.totalorder %s87, %s90
    %p96 = scmp.eq.s32.totalorder %s9, 0
    %p97 = por %p95, %p96
    %p98 = scmp.ne.s32.totalorder %s87, %s90
    %p99 = scmp.eq.s32.totalorder %s14, 1
    %p100 = por %p98, %p99
    %p101 = scmp.ne.s32.totalorder %s90, %s91
    %p102 = scmp.eq.s32.totalorder %s14, 0
    %p103 = por %p101, %p102
    %p104 = scmp.ne.s32.totalorder %s90, %s91
    %p105 = scmp.eq.s32.totalorder %s15, 1
    %p106 = por %p104, %p105
    %p108 = scmp.ne.s32.totalorder %s91, %s107
    %p109 = scmp.eq.s32.totalorder %s15, 0
    %p110 = por %p108, %p109
    %p111 = scmp.le.s32.totalorder 1, %s9
    %p112 = scmp.lt.s32.totalorder %s9, 3
    %p113 = pnand %p111, %p112
    %p114 = pneg %p113
    // Predicated region
    $region9: #{forward.3} parent=5 // pred_check
      _
    $region10: #{forward.3} parent=5 // pred_check_branch
      %116 = sbr.rel (%p113) target = $region12
    $region11: #{forward.3} parent=5 // pred_region
      %s117 = ssub.s32 %s9, 1
      // Predicated region
      $region13: #{forward.3} parent=11 // pred_check
        %p118 = pneg %p56
      $region14: #{forward.3} parent=11 // pred_check_branch
        %120 = sbr.rel (%p118) target = $region16
      $region15: #{forward.3} parent=11 // pred_region
        _
      $region16: #{forward.3} parent=11 // pred_fallthru
        _
      // Predicated region
      $region17: #{forward.3} parent=11 // pred_check
        %p121 = pneg %p77
      $region18: #{forward.3} parent=11 // pred_check_branch
        %123 = sbr.rel (%p121) target = $region20
      $region19: #{forward.3} parent=11 // pred_region
        _
      $region20: #{forward.3} parent=11 // pred_fallthru
        _
    $region12: #{forward.3} parent=5 // pred_fallthru
      _
    %p124 = scmp.lt.s32.totalorder %s9, 2
    // Predicated region
    $region21: #{forward.3} parent=5 // pred_check
      %p125 = pneg %p124
    $region22: #{forward.3} parent=5 // pred_check_branch
      %127 = sbr.rel (%p125) target = $region24
    $region23: #{forward.3} parent=5 // pred_region
      // Predicated region
      $region25: #{forward.3} parent=23 // pred_check
        %p128 = pneg %p29
      $region26: #{forward.3} parent=23 // pred_check_branch
        %130 = sbr.rel (%p128) target = $region28
      $region27: #{forward.3} parent=23 // pred_region
        %s131 = smul.u32 8, %s9
        %p132 = scmp.lt.s32.totalorder %s131, 15
        %s133 = scalar_select %p132, %s131, 15
        %s134 = smul.addr %s133, 2
        %s135 = smul.addr %s134, 4
        %s136 = scalar_lea.vmem %s0, %s135
        %s137 = smul.u32 8, %s9
      $region28: #{forward.3} parent=23 // pred_fallthru
        _
    $region24: #{forward.3} parent=5 // pred_fallthru
      _
    %p138 = scmp.le.s32.totalorder 1, %s9
    %p139 = scmp.lt.s32.totalorder %s9, 3
    %p140 = pnand %p138, %p139
    %p141 = pneg %p140
    // Predicated region
    $region29: #{forward.3} parent=5 // pred_check
      _
    $region30: #{forward.3} parent=5 // pred_check_branch
      %143 = sbr.rel (%p140) target = $region32
    $region31: #{forward.3} parent=5 // pred_region
      %s144 = ssub.s32 %s9, 1
      %s145 = smul.u32 8, %s14
      %p146 = scmp.lt.s32.totalorder %s145, 15
      %s147 = scalar_select %p146, %s145, 15
      %s148 = smul.addr %s147, 2
      %s149 = smul.addr %s148, 4
      %s150 = scalar_lea.vmem %s0, %s149
      %p151 = pneg %p35
      %p152 = pneg %p32
      %p153 = pneg %p56
      %p154 = pneg %p53
      %p155 = pneg %p77
      %p156 = pneg %p74
      %p157 = pneg %p103
      %p158 = pneg %p100
      %s159 = smul.u32 8, %s14
      %p160 = scmp.lt.s32.totalorder %s159, 15
      %s161 = scalar_select %p160, %s159, 15
      %s162 = smul.addr %s161, 8
      %s163 = scalar_lea.vmem %s3, %s162
      %s164 = smul.u32 8, %s14
      %p165 = scmp.lt.s32.totalorder %s164, 15
      %s166 = scalar_select %p165, %s164, 15
      %s167 = smul.addr %s166, 2
      %s168 = smul.addr %s167, 4
      %s169 = scalar_lea.vmem %s0, %s168
      %s170 = smul.u32 8, %s14
      %s171 = smul.u32 8, %s14
      %p172 = scmp.lt.s32.totalorder %s171, 15
      %s173 = scalar_select %p172, %s171, 15
      %s174 = smul.addr %s173, 8
      %s175 = scalar_lea.vmem %s3, %s174
      %s176 = smul.u32 8, %s14
      %v177 = vld [vmem:[%s169] sm:$0xff]
      %v178 = vld [vmem:[%s169 + $0x8] sm:$0xff]
      %v179 = vld [vmem:[%s169 + $0x10] sm:$0xff]
      %v180 = vld [vmem:[%s169 + $0x18] sm:$0xff]
      %v181 = vld [vmem:[%s169 + $0x20] sm:$0xff]
      %v182 = vld [vmem:[%s169 + $0x28] sm:$0xff]
      %v183 = vld [vmem:[%s169 + $0x30] sm:$0xff]
      %v184 = vld [vmem:[%s169 + $0x38] sm:$0xff]
      %v185 = vld [vmem:[%s1] sm:$0xf]
      %v186 = vld [vmem:[%s1 + $0x4] sm:$0xf]
      %v187 = vld [vmem:[%s1 + $0x8] sm:$0xf]
      %v188 = vld [vmem:[%s1 + $0xc] sm:$0xf]
      %v189 = vld [vmem:[%s1 + $0x10] sm:$0xf]
      %v190 = vld [vmem:[%s1 + $0x14] sm:$0xf]
      %v191 = vld [vmem:[%s1 + $0x18] sm:$0xf]
      %v192 = vld [vmem:[%s1 + $0x1c] sm:$0xf]
      %v193 = vld [vmem:[%s1 + $0x20] sm:$0xf]
      %v194 = vld [vmem:[%s1 + $0x24] sm:$0xf]
      %v195 = vld [vmem:[%s1 + $0x28] sm:$0xf]
      %v196 = vld [vmem:[%s1 + $0x2c] sm:$0xf]
      %v197 = vld [vmem:[%s1 + $0x30] sm:$0xf]
      %v198 = vld [vmem:[%s1 + $0x34] sm:$0xf]
      %v199 = vld [vmem:[%s1 + $0x38] sm:$0xf]
      %v200 = vld [vmem:[%s1 + $0x3c] sm:$0xf]
      %v201 = vld [vmem:[%s1 + $0x40] sm:$0xf]
      %v202 = vld [vmem:[%s1 + $0x44] sm:$0xf]
      %v203 = vld [vmem:[%s1 + $0x48] sm:$0xf]
      %v204 = vld [vmem:[%s1 + $0x4c] sm:$0xf]
      %v205 = vld [vmem:[%s1 + $0x50] sm:$0xf]
      %v206 = vld [vmem:[%s1 + $0x54] sm:$0xf]
      %v207 = vld [vmem:[%s1 + $0x58] sm:$0xf]
      %v208 = vld [vmem:[%s1 + $0x5c] sm:$0xf]
      %v209 = vld [vmem:[%s1 + $0x60] sm:$0xf]
      %v210 = vld [vmem:[%s1 + $0x64] sm:$0xf]
      %v211 = vld [vmem:[%s1 + $0x68] sm:$0xf]
      %v212 = vld [vmem:[%s1 + $0x6c] sm:$0xf]
      %v213 = vld [vmem:[%s1 + $0x70] sm:$0xf]
      %v214 = vld [vmem:[%s1 + $0x74] sm:$0xf]
      %v215 = vld [vmem:[%s1 + $0x78] sm:$0xf]
      %v216 = vld [vmem:[%s1 + $0x7c] sm:$0xf]
      %v217 = vld [vmem:[%s2] sm:$0x1]
      %v219 = vperm.slane %v217, 0
      %v229 = vunpack.c.l.b16 %v177
      %v230 = vunpack.c.h.b16 %v177
      %v231 = vunpack.c.l.b16 %v178
      %v232 = vunpack.c.h.b16 %v178
      %v233 = vunpack.c.l.b16 %v179
      %v234 = vunpack.c.h.b16 %v179
      %v235 = vunpack.c.l.b16 %v180
      %v236 = vunpack.c.h.b16 %v180
      %v237 = vunpack.c.l.b16 %v181
      %v238 = vunpack.c.h.b16 %v181
      %v239 = vunpack.c.l.b16 %v182
      %v240 = vunpack.c.h.b16 %v182
      %v241 = vunpack.c.l.b16 %v183
      %v242 = vunpack.c.h.b16 %v183
      %v243 = vunpack.c.l.b16 %v184
      %v244 = vunpack.c.h.b16 %v184
      %v245 = vpack.c.b16 %v231, %v229
      %v246 = vpack.c.b16 %v232, %v230
      %v247 = vpack.c.b16 %v235, %v233
      %v248 = vpack.c.b16 %v236, %v234
      %v249 = vpack.c.b16 %v239, %v237
      %v250 = vpack.c.b16 %v240, %v238
      %v251 = vpack.c.b16 %v243, %v241
      %v252 = vpack.c.b16 %v244, %v242
      %v293 = vunpack.c.l.b16 %v185
      %v294 = vunpack.c.l.b16 %v186
      %v295 = vunpack.c.l.b16 %v187
      %v296 = vunpack.c.l.b16 %v188
      %v297 = vunpack.c.l.b16 %v189
      %v298 = vunpack.c.l.b16 %v190
      %v299 = vunpack.c.l.b16 %v191
      %v300 = vunpack.c.l.b16 %v192
      %v301 = vunpack.c.l.b16 %v193
      %v302 = vunpack.c.l.b16 %v194
      %v303 = vunpack.c.l.b16 %v195
      %v304 = vunpack.c.l.b16 %v196
      %v305 = vunpack.c.l.b16 %v197
      %v306 = vunpack.c.l.b16 %v198
      %v307 = vunpack.c.l.b16 %v199
      %v308 = vunpack.c.l.b16 %v200
      %v309 = vunpack.c.l.b16 %v201
      %v310 = vunpack.c.l.b16 %v202
      %v311 = vunpack.c.l.b16 %v203
      %v312 = vunpack.c.l.b16 %v204
      %v313 = vunpack.c.l.b16 %v205
      %v314 = vunpack.c.l.b16 %v206
      %v315 = vunpack.c.l.b16 %v207
      %v316 = vunpack.c.l.b16 %v208
      %v317 = vunpack.c.l.b16 %v209
      %v318 = vunpack.c.l.b16 %v210
      %v319 = vunpack.c.l.b16 %v211
      %v320 = vunpack.c.l.b16 %v212
      %v321 = vunpack.c.l.b16 %v213
      %v322 = vunpack.c.l.b16 %v214
      %v323 = vunpack.c.l.b16 %v215
      %v324 = vunpack.c.l.b16 %v216
      %v325 = vpack.c.b16 %v294, %v293
      %v326 = vpack.c.b16 %v296, %v295
      %v327 = vpack.c.b16 %v298, %v297
      %v328 = vpack.c.b16 %v300, %v299
      %v329 = vpack.c.b16 %v302, %v301
      %v330 = vpack.c.b16 %v304, %v303
      %v331 = vpack.c.b16 %v306, %v305
      %v332 = vpack.c.b16 %v308, %v307
      %v333 = vpack.c.b16 %v310, %v309
      %v334 = vpack.c.b16 %v312, %v311
      %v335 = vpack.c.b16 %v314, %v313
      %v336 = vpack.c.b16 %v316, %v315
      %v337 = vpack.c.b16 %v318, %v317
      %v338 = vpack.c.b16 %v320, %v319
      %v339 = vpack.c.b16 %v322, %v321
      %v340 = vpack.c.b16 %v324, %v323
      %357 = vmatpush.bf16.msra.mxu0 %v332
      %358 = vmatpush.bf16.msra.mxu0 %v331
      %359 = vmatpush.bf16.msra.mxu0 %v330
      %360 = vmatpush.bf16.msra.mxu0 %v329
      %361 = vmatpush.bf16.msra.mxu0 %v328
      %362 = vmatpush.bf16.msra.mxu0 %v327
      %363 = vmatpush.bf16.msra.mxu0 %v326
      %364 = vmatpush.bf16.msra.mxu0 %v325
      %365 = vmatmul.bf16.gmra.mxu0 %v245
      %v366 = vpop.f32.mrf.mxu0
      %v367 = vadd.f32 %v219, %v366
      %v368 = vpop.f32.mrf.mxu0
      %v369 = vadd.f32 %v219, %v368
      %370 = vmatmul.bf16.gmra.mxu0 %v247
      %v371 = vpop.f32.mrf.mxu0
      %v372 = vadd.f32 %v219, %v371
      %v373 = vpop.f32.mrf.mxu0
      %v374 = vadd.f32 %v219, %v373
      %375 = vmatmul.bf16.gmra.mxu0 %v249
      %v376 = vpop.f32.mrf.mxu0
      %v377 = vadd.f32 %v219, %v376
      %v378 = vpop.f32.mrf.mxu0
      %v379 = vadd.f32 %v219, %v378
      %380 = vmatmul.bf16.gmra.mxu0 %v251
      %v381 = vpop.f32.mrf.mxu0
      %v382 = vadd.f32 %v219, %v381
      %v383 = vpop.f32.mrf.mxu0
      %v384 = vadd.f32 %v219, %v383
      %385 = vdwg.mxu0
      %386 = vmatpush.bf16.msra.mxu0 %v340
      %387 = vmatpush.bf16.msra.mxu0 %v339
      %388 = vmatpush.bf16.msra.mxu0 %v338
      %389 = vmatpush.bf16.msra.mxu0 %v337
      %390 = vmatpush.bf16.msra.mxu0 %v336
      %391 = vmatpush.bf16.msra.mxu0 %v335
      %392 = vmatpush.bf16.msra.mxu0 %v334
      %393 = vmatpush.bf16.msra.mxu0 %v333
      %394 = vmatmul.bf16.gmra.mxu0 %v246
      %v395 = vpop.f32.mrf.mxu0
      %v396 = vadd.f32 %v367, %v395
      %v397 = vpop.f32.mrf.mxu0
      %v398 = vadd.f32 %v369, %v397
      %399 = vmatmul.bf16.gmra.mxu0 %v248
      %v400 = vpop.f32.mrf.mxu0
      %v401 = vadd.f32 %v372, %v400
      %v402 = vpop.f32.mrf.mxu0
      %v403 = vadd.f32 %v374, %v402
      %404 = vmatmul.bf16.gmra.mxu0 %v250
      %v405 = vpop.f32.mrf.mxu0
      %v406 = vadd.f32 %v377, %v405
      %v407 = vpop.f32.mrf.mxu0
      %v408 = vadd.f32 %v379, %v407
      %409 = vmatmul.bf16.gmra.mxu0 %v252
      %v410 = vpop.f32.mrf.mxu0
      %v411 = vadd.f32 %v382, %v410
      %v412 = vpop.f32.mrf.mxu0
      %v413 = vadd.f32 %v384, %v412
      %414 = vdwg.mxu0
      %v415 = vmax.f32 %v396, 0.0
      %v416 = vmax.f32 %v398, 0.0
      %v417 = vmax.f32 %v401, 0.0
      %v418 = vmax.f32 %v403, 0.0
      %v419 = vmax.f32 %v406, 0.0
      %v420 = vmax.f32 %v408, 0.0
      %v421 = vmax.f32 %v411, 0.0
      %v422 = vmax.f32 %v413, 0.0
      %vm423 = vcmask 261120
      %424 = vst.msk [vmem:[%s175] sm:$0xff] %vm423, %v415
      %425 = vst.msk [vmem:[%s175 + $0x8] sm:$0xff] %vm423, %v416
      %426 = vst.msk [vmem:[%s175 + $0x10] sm:$0xff] %vm423, %v417
      %427 = vst.msk [vmem:[%s175 + $0x18] sm:$0xff] %vm423, %v418
      %428 = vst.msk [vmem:[%s175 + $0x20] sm:$0xff] %vm423, %v419
      %429 = vst.msk [vmem:[%s175 + $0x28] sm:$0xff] %vm423, %v420
      %430 = vst.msk [vmem:[%s175 + $0x30] sm:$0xff] %vm423, %v421
      %431 = vst.msk [vmem:[%s175 + $0x38] sm:$0xff] %vm423, %v422
      %s432 = smul.u32 8, %s14
      %p433 = scmp.lt.s32.totalorder %s432, 15
      %s434 = scalar_select %p433, %s432, 15
      %s435 = smul.addr %s434, 8
      %s436 = scalar_lea.vmem %s3, %s435
      // Predicated region
      $region33: #{forward.3} parent=31 // pred_check
        %p437 = pneg %p100
      $region34: #{forward.3} parent=31 // pred_check_branch
        %439 = sbr.rel (%p437) target = $region36
      $region35: #{forward.3} parent=31 // pred_region
        %s440 = smul.u32 8, %s14
      $region36: #{forward.3} parent=31 // pred_fallthru
        _
    $region32: #{forward.3} parent=5 // pred_fallthru
      _
    %p441 = scmp.le.s32.totalorder 2, %s9
    // Predicated region
    $region37: #{forward.3} parent=5 // pred_check
      %p442 = pneg %p441
    $region38: #{forward.3} parent=5 // pred_check_branch
      %444 = sbr.rel (%p442) target = $region40
    $region39: #{forward.3} parent=5 // pred_region
      %s445 = ssub.s32 %s9, 2
      // Predicated region
      $region41: #{forward.3} parent=39 // pred_check
        %p446 = pneg %p106
      $region42: #{forward.3} parent=39 // pred_check_branch
        %448 = sbr.rel (%p446) target = $region44
      $region43: #{forward.3} parent=39 // pred_region
        %s449 = smul.u32 8, %s15
        %p450 = scmp.lt.s32.totalorder %s449, 15
        %s451 = scalar_select %p450, %s449, 15
        %s452 = smul.addr %s451, 8
        %s453 = scalar_lea.vmem %s3, %s452
      $region44: #{forward.3} parent=39 // pred_fallthru
        _
    $region40: #{forward.3} parent=5 // pred_fallthru
      _
  $region6: #{forward.3} parent=0 // loop_footer
    %s13 = sadd.s32 1, %s9
  $region7: #{forward.3} parent=0 // loop_footer_branch
    %8 = sbr.rel target = $region3
  $region8: #{forward.3} parent=0 // loop_exit
    _

// kernel: forward.4
$region0: #{forward.4}
  #allocation0 [shape = 'u32[]', space=smem, size = 0x4, offset = 0x4, fixed_abs, tag = 'smem constant byte address 0x4 - core index']
  #allocation1 [shape = 'u32[72,128]{1,0:T(1,128)}', space=vmem, size = 0x9000, scoped, tag = 'internal scratch']
  %s0 = inlined_call_operand.vmem [shape: bf16[18,512], index: 0, kind: input, shape index: {}]
  %s1 = inlined_call_operand.vmem [shape: bf16[512,64], index: 1, kind: input, shape index: {}]
  %s2 = inlined_call_operand.vmem [shape: f32[1,64], index: 2, kind: input, shape index: {}]
  %s3 = inlined_call_operand.vmem [shape: f32[18,64], index: 3, kind: output, shape index: {}]
  %s4 = sld [smem:[#allocation0]]
  $region22: #{forward.4} parent=0
    _
  %s6 = ssub.s32 1, %s4
  %s7 = scalar_select 0, %s6, %s4
  // Predicated region
  $region2: #{forward.4} parent=0 // pred_check
    _
  $region3: #{forward.4} parent=0 // pred_check_branch
    %9 = sbr.rel (0) target = $region5
  $region4: #{forward.4} parent=0 // pred_region
    _
  $region5: #{forward.4} parent=0 // pred_fallthru
    _
  // Predicated region
  $region6: #{forward.4} parent=0 // pred_check
    _
  $region7: #{forward.4} parent=0 // pred_check_branch
    %11 = sbr.rel (0) target = $region9
  $region8: #{forward.4} parent=0 // pred_region
    _
  $region9: #{forward.4} parent=0 // pred_fallthru
    _
  // Predicated region
  $region10: #{forward.4} parent=0 // pred_check
    _
  $region11: #{forward.4} parent=0 // pred_check_branch
    %13 = sbr.rel (0) target = $region13
  $region12: #{forward.4} parent=0 // pred_region
    _
  $region13: #{forward.4} parent=0 // pred_fallthru
    _
  %v14 = vld [vmem:[%s0] sm:$0xff]
  %v15 = vld [vmem:[%s0 + $0x8] sm:$0xff]
  %v16 = vld [vmem:[%s0 + $0x10] sm:$0xff]
  %v17 = vld [vmem:[%s0 + $0x18] sm:$0xff]
  %v18 = vld [vmem:[%s0 + $0x20] sm:$0x11]
  %v19 = vld [vmem:[%s0 + $0x28] sm:$0x11]
  %v20 = vld [vmem:[%s1] sm:$0xf]
  %v21 = vld [vmem:[%s1 + $0x4] sm:$0xf]
  %v22 = vld [vmem:[%s1 + $0x8] sm:$0xf]
  %v23 = vld [vmem:[%s1 + $0xc] sm:$0xf]
  %v24 = vld [vmem:[%s1 + $0x10] sm:$0xf]
  %v25 = vld [vmem:[%s1 + $0x14] sm:$0xf]
  %v26 = vld [vmem:[%s1 + $0x18] sm:$0xf]
  %v27 = vld [vmem:[%s1 + $0x1c] sm:$0xf]
  %v28 = vld [vmem:[%s1 + $0x20] sm:$0xf]
  %v29 = vld [vmem:[%s1 + $0x24] sm:$0xf]
  %v30 = vld [vmem:[%s1 + $0x28] sm:$0xf]
  %v31 = vld [vmem:[%s1 + $0x2c] sm:$0xf]
  %v32 = vld [vmem:[%s1 + $0x30] sm:$0xf]
  %v33 = vld [vmem:[%s1 + $0x34] sm:$0xf]
  %v34 = vld [vmem:[%s1 + $0x38] sm:$0xf]
  %v35 = vld [vmem:[%s1 + $0x3c] sm:$0xf]
  %v36 = vld [vmem:[%s1 + $0x40] sm:$0xf]
  %v37 = vld [vmem:[%s1 + $0x44] sm:$0xf]
  %v38 = vld [vmem:[%s1 + $0x48] sm:$0xf]
  %v39 = vld [vmem:[%s1 + $0x4c] sm:$0xf]
  %v40 = vld [vmem:[%s1 + $0x50] sm:$0xf]
  %v41 = vld [vmem:[%s1 + $0x54] sm:$0xf]
  %v42 = vld [vmem:[%s1 + $0x58] sm:$0xf]
  %v43 = vld [vmem:[%s1 + $0x5c] sm:$0xf]
  %v44 = vld [vmem:[%s1 + $0x60] sm:$0xf]
  %v45 = vld [vmem:[%s1 + $0x64] sm:$0xf]
  %v46 = vld [vmem:[%s1 + $0x68] sm:$0xf]
  %v47 = vld [vmem:[%s1 + $0x6c] sm:$0xf]
  %v48 = vld [vmem:[%s1 + $0x70] sm:$0xf]
  %v49 = vld [vmem:[%s1 + $0x74] sm:$0xf]
  %v50 = vld [vmem:[%s1 + $0x78] sm:$0xf]
  %v51 = vld [vmem:[%s1 + $0x7c] sm:$0xf]
  %v52 = vld [vmem:[%s1 + $0x80] sm:$0xf]
  %v53 = vld [vmem:[%s1 + $0x84] sm:$0xf]
  %v54 = vld [vmem:[%s1 + $0x88] sm:$0xf]
  %v55 = vld [vmem:[%s1 + $0x8c] sm:$0xf]
  %v56 = vld [vmem:[%s1 + $0x90] sm:$0xf]
  %v57 = vld [vmem:[%s1 + $0x94] sm:$0xf]
  %v58 = vld [vmem:[%s1 + $0x98] sm:$0xf]
  %v59 = vld [vmem:[%s1 + $0x9c] sm:$0xf]
  %v60 = vld [vmem:[%s1 + $0xa0] sm:$0xf]
  %v61 = vld [vmem:[%s1 + $0xa4] sm:$0xf]
  %v62 = vld [vmem:[%s1 + $0xa8] sm:$0xf]
  %v63 = vld [vmem:[%s1 + $0xac] sm:$0xf]
  %v64 = vld [vmem:[%s1 + $0xb0] sm:$0xf]
  %v65 = vld [vmem:[%s1 + $0xb4] sm:$0xf]
  %v66 = vld [vmem:[%s1 + $0xb8] sm:$0xf]
  %v67 = vld [vmem:[%s1 + $0xbc] sm:$0xf]
  %v68 = vld [vmem:[%s1 + $0xc0] sm:$0xf]
  %v69 = vld [vmem:[%s1 + $0xc4] sm:$0xf]
  %v70 = vld [vmem:[%s1 + $0xc8] sm:$0xf]
  %v71 = vld [vmem:[%s1 + $0xcc] sm:$0xf]
  %v72 = vld [vmem:[%s1 + $0xd0] sm:$0xf]
  %v73 = vld [vmem:[%s1 + $0xd4] sm:$0xf]
  %v74 = vld [vmem:[%s1 + $0xd8] sm:$0xf]
  %v75 = vld [vmem:[%s1 + $0xdc] sm:$0xf]
  %v76 = vld [vmem:[%s1 + $0xe0] sm:$0xf]
  %v77 = vld [vmem:[%s1 + $0xe4] sm:$0xf]
  %v78 = vld [vmem:[%s1 + $0xe8] sm:$0xf]
  %v79 = vld [vmem:[%s1 + $0xec] sm:$0xf]
  %v80 = vld [vmem:[%s1 + $0xf0] sm:$0xf]
  %v81 = vld [vmem:[%s1 + $0xf4] sm:$0xf]
  %v82 = vld [vmem:[%s1 + $0xf8] sm:$0xf]
  %v83 = vld [vmem:[%s1 + $0xfc] sm:$0xf]
  %v84 = vld [vmem:[%s2] sm:$0x1]
  %v86 = vperm.slane %v84, 0
  %v94 = vunpack.c.l.b16 %v14
  %v95 = vunpack.c.h.b16 %v14
  %v96 = vunpack.c.l.b16 %v15
  %v97 = vunpack.c.h.b16 %v15
  %v98 = vunpack.c.l.b16 %v16
  %v99 = vunpack.c.h.b16 %v16
  %v100 = vunpack.c.l.b16 %v17
  %v101 = vunpack.c.h.b16 %v17
  %v102 = vunpack.c.l.b16 %v18
  %v103 = vunpack.c.h.b16 %v18
  %v104 = vunpack.c.l.b16 %v19
  %v105 = vunpack.c.h.b16 %v19
  %v106 = vpack.c.b16 %v98, %v94
  %v107 = vpack.c.b16 %v99, %v95
  %v108 = vpack.c.b16 %v100, %v96
  %v109 = vpack.c.b16 %v101, %v97
  %v110 = vpack.c.b16 %v102, %v102
  %v111 = vpack.c.b16 %v103, %v103
  %v112 = vpack.c.b16 %v104, %v104
  %v113 = vpack.c.b16 %v105, %v105
  %v186 = vunpack.c.l.b16 %v20
  %v187 = vunpack.c.l.b16 %v21
  %v188 = vunpack.c.l.b16 %v22
  %v189 = vunpack.c.l.b16 %v23
  %v190 = vunpack.c.l.b16 %v24
  %v191 = vunpack.c.l.b16 %v25
  %v192 = vunpack.c.l.b16 %v26
  %v193 = vunpack.c.l.b16 %v27
  %v194 = vunpack.c.l.b16 %v28
  %v195 = vunpack.c.l.b16 %v29
  %v196 = vunpack.c.l.b16 %v30
  %v197 = vunpack.c.l.b16 %v31
  %v198 = vunpack.c.l.b16 %v32
  %v199 = vunpack.c.l.b16 %v33
  %v200 = vunpack.c.l.b16 %v34
  %v201 = vunpack.c.l.b16 %v35
  %v202 = vunpack.c.l.b16 %v36
  %v203 = vunpack.c.l.b16 %v37
  %v204 = vunpack.c.l.b16 %v38
  %v205 = vunpack.c.l.b16 %v39
  %v206 = vunpack.c.l.b16 %v40
  %v207 = vunpack.c.l.b16 %v41
  %v208 = vunpack.c.l.b16 %v42
  %v209 = vunpack.c.l.b16 %v43
  %v210 = vunpack.c.l.b16 %v44
  %v211 = vunpack.c.l.b16 %v45
  %v212 = vunpack.c.l.b16 %v46
  %v213 = vunpack.c.l.b16 %v47
  %v214 = vunpack.c.l.b16 %v48
  %v215 = vunpack.c.l.b16 %v49
  %v216 = vunpack.c.l.b16 %v50
  %v217 = vunpack.c.l.b16 %v51
  %v218 = vunpack.c.l.b16 %v52
  %v219 = vunpack.c.l.b16 %v53
  %v220 = vunpack.c.l.b16 %v54
  %v221 = vunpack.c.l.b16 %v55
  %v222 = vunpack.c.l.b16 %v56
  %v223 = vunpack.c.l.b16 %v57
  %v224 = vunpack.c.l.b16 %v58
  %v225 = vunpack.c.l.b16 %v59
  %v226 = vunpack.c.l.b16 %v60
  %v227 = vunpack.c.l.b16 %v61
  %v228 = vunpack.c.l.b16 %v62
  %v229 = vunpack.c.l.b16 %v63
  %v230 = vunpack.c.l.b16 %v64
  %v231 = vunpack.c.l.b16 %v65
  %v232 = vunpack.c.l.b16 %v66
  %v233 = vunpack.c.l.b16 %v67
  %v234 = vunpack.c.l.b16 %v68
  %v235 = vunpack.c.l.b16 %v69
  %v236 = vunpack.c.l.b16 %v70
  %v237 = vunpack.c.l.b16 %v71
  %v238 = vunpack.c.l.b16 %v72
  %v239 = vunpack.c.l.b16 %v73
  %v240 = vunpack.c.l.b16 %v74
  %v241 = vunpack.c.l.b16 %v75
  %v242 = vunpack.c.l.b16 %v76
  %v243 = vunpack.c.l.b16 %v77
  %v244 = vunpack.c.l.b16 %v78
  %v245 = vunpack.c.l.b16 %v79
  %v246 = vunpack.c.l.b16 %v80
  %v247 = vunpack.c.l.b16 %v81
  %v248 = vunpack.c.l.b16 %v82
  %v249 = vunpack.c.l.b16 %v83
  %v250 = vpack.c.b16 %v187, %v186
  %v251 = vpack.c.b16 %v189, %v188
  %v252 = vpack.c.b16 %v191, %v190
  %v253 = vpack.c.b16 %v193, %v192
  %v254 = vpack.c.b16 %v195, %v194
  %v255 = vpack.c.b16 %v197, %v196
  %v256 = vpack.c.b16 %v199, %v198
  %v257 = vpack.c.b16 %v201, %v200
  %v258 = vpack.c.b16 %v203, %v202
  %v259 = vpack.c.b16 %v205, %v204
  %v260 = vpack.c.b16 %v207, %v206
  %v261 = vpack.c.b16 %v209, %v208
  %v262 = vpack.c.b16 %v211, %v210
  %v263 = vpack.c.b16 %v213, %v212
  %v264 = vpack.c.b16 %v215, %v214
  %v265 = vpack.c.b16 %v217, %v216
  %v266 = vpack.c.b16 %v219, %v218
  %v267 = vpack.c.b16 %v221, %v220
  %v268 = vpack.c.b16 %v223, %v222
  %v269 = vpack.c.b16 %v225, %v224
  %v270 = vpack.c.b16 %v227, %v226
  %v271 = vpack.c.b16 %v229, %v228
  %v272 = vpack.c.b16 %v231, %v230
  %v273 = vpack.c.b16 %v233, %v232
  %v274 = vpack.c.b16 %v235, %v234
  %v275 = vpack.c.b16 %v237, %v236
  %v276 = vpack.c.b16 %v239, %v238
  %v277 = vpack.c.b16 %v241, %v240
  %v278 = vpack.c.b16 %v243, %v242
  %v279 = vpack.c.b16 %v245, %v244
  %v280 = vpack.c.b16 %v247, %v246
  %v281 = vpack.c.b16 %v249, %v248
  %314 = vmatpush.bf16.msra.mxu0 %v257
  %315 = vmatpush.bf16.msra.mxu0 %v256
  %316 = vmatpush.bf16.msra.mxu0 %v255
  %317 = vmatpush.bf16.msra.mxu0 %v254
  %318 = vmatpush.bf16.msra.mxu0 %v253
  %319 = vmatpush.bf16.msra.mxu0 %v252
  %320 = vmatpush.bf16.msra.mxu0 %v251
  %321 = vmatpush.bf16.msra.mxu0 %v250
  %322 = vmatmul.bf16.gmra.mxu0 %v106
  %v323 = vpop.f32.mrf.mxu0
  %v324 = vadd.f32 %v86, %v323
  %v325 = vpop.f32.mrf.mxu0
  %v326 = vadd.f32 %v86, %v325
  %327 = vmatmul.bf16.gmra.mxu0 %v110
  %v328 = vpop.f32.mrf.mxu0
  %v329 = vadd.f32 %v86, %v328
  %v330 = vpop.f32.mrf.mxu0
  %331 = vdwg.mxu0
  %332 = vmatpush.bf16.msra.mxu0 %v265
  %333 = vmatpush.bf16.msra.mxu0 %v264
  %334 = vmatpush.bf16.msra.mxu0 %v263
  %335 = vmatpush.bf16.msra.mxu0 %v262
  %336 = vmatpush.bf16.msra.mxu0 %v261
  %337 = vmatpush.bf16.msra.mxu0 %v260
  %338 = vmatpush.bf16.msra.mxu0 %v259
  %339 = vmatpush.bf16.msra.mxu0 %v258
  %340 = vmatmul.bf16.gmra.mxu0 %v107
  %v341 = vpop.f32.mrf.mxu0
  %v342 = vadd.f32 %v324, %v341
  %v343 = vpop.f32.mrf.mxu0
  %v344 = vadd.f32 %v326, %v343
  %345 = vmatmul.bf16.gmra.mxu0 %v111
  %v346 = vpop.f32.mrf.mxu0
  %v347 = vadd.f32 %v329, %v346
  %v348 = vpop.f32.mrf.mxu0
  %349 = vdwg.mxu0
  %350 = vmatpush.bf16.msra.mxu0 %v273
  %351 = vmatpush.bf16.msra.mxu0 %v272
  %352 = vmatpush.bf16.msra.mxu0 %v271
  %353 = vmatpush.bf16.msra.mxu0 %v270
  %354 = vmatpush.bf16.msra.mxu0 %v269
  %355 = vmatpush.bf16.msra.mxu0 %v268
  %356 = vmatpush.bf16.msra.mxu0 %v267
  %357 = vmatpush.bf16.msra.mxu0 %v266
  %358 = vmatmul.bf16.gmra.mxu0 %v108
  %v359 = vpop.f32.mrf.mxu0
  %v360 = vadd.f32 %v342, %v359
  %v361 = vpop.f32.mrf.mxu0
  %v362 = vadd.f32 %v344, %v361
  %363 = vmatmul.bf16.gmra.mxu0 %v112
  %v364 = vpop.f32.mrf.mxu0
  %v365 = vadd.f32 %v347, %v364
  %v366 = vpop.f32.mrf.mxu0
  %367 = vdwg.mxu0
  %368 = vmatpush.bf16.msra.mxu0 %v281
  %369 = vmatpush.bf16.msra.mxu0 %v280
  %370 = vmatpush.bf16.msra.mxu0 %v279
  %371 = vmatpush.bf16.msra.mxu0 %v278
  %372 = vmatpush.bf16.msra.mxu0 %v277
  %373 = vmatpush.bf16.msra.mxu0 %v276
  %374 = vmatpush.bf16.msra.mxu0 %v275
  %375 = vmatpush.bf16.msra.mxu0 %v274
  %376 = vmatmul.bf16.gmra.mxu0 %v109
  %v377 = vpop.f32.mrf.mxu0
  %v378 = vadd.f32 %v360, %v377
  %v379 = vpop.f32.mrf.mxu0
  %v380 = vadd.f32 %v362, %v379
  %381 = vmatmul.bf16.gmra.mxu0 %v113
  %v382 = vpop.f32.mrf.mxu0
  %v383 = vadd.f32 %v365, %v382
  %v384 = vpop.f32.mrf.mxu0
  %385 = vdwg.mxu0
  %v386 = vmax.f32 %v378, 0.0
  %v387 = vmax.f32 %v380, 0.0
  %v388 = vmax.f32 %v383, 0.0
  %vm389 = vcmask 523264
  %390 = vst.msk [vmem:[%s3] sm:$0xff] %vm389, %v386
  %391 = vst.msk [vmem:[%s3 + $0x8] sm:$0xff] %vm389, %v387
  %vm392 = vcmask 517120
  %393 = vst.msk [vmem:[%s3 + $0x10] sm:$0x3] %vm392, %v388
  // Predicated region
  $region14: #{forward.4} parent=0 // pred_check
    _
  $region15: #{forward.4} parent=0 // pred_check_branch
    %395 = sbr.rel (0) target = $region17
  $region16: #{forward.4} parent=0 // pred_region
    _
  $region17: #{forward.4} parent=0 // pred_fallthru
    _
  // Predicated region
  $region18: #{forward.4} parent=0 // pred_check
    _
  $region19: #{forward.4} parent=0 // pred_check_branch
    %397 = sbr.rel (0) target = $region21
  $region20: #{forward.4} parent=0 // pred_region
    _
  $region21: #{forward.4} parent=0 // pred_fallthru
    _

// kernel: forward.5
$region0: #{forward.5}
  #allocation0 [shape = 'u32[]', space=smem, size = 0x4, offset = 0x4, fixed_abs, tag = 'smem constant byte address 0x4 - core index']
  #allocation1 [shape = 'u32[72,128]{1,0:T(1,128)}', space=vmem, size = 0x9000, scoped, tag = 'internal scratch']
  %s0 = inlined_call_operand.vmem [shape: bf16[2,640], index: 0, kind: input, shape index: {}]
  %s1 = inlined_call_operand.vmem [shape: bf16[640,64], index: 1, kind: input, shape index: {}]
  %s2 = inlined_call_operand.vmem [shape: f32[1,64], index: 2, kind: input, shape index: {}]
  %s3 = inlined_call_operand.vmem [shape: bf16[64,512], index: 3, kind: input, shape index: {}]
  %s4 = inlined_call_operand.vmem [shape: f32[1,512], index: 4, kind: input, shape index: {}]
  %s5 = inlined_call_operand.vmem [shape: bf16[512,128], index: 5, kind: input, shape index: {}]
  %s6 = inlined_call_operand.vmem [shape: f32[1,128], index: 6, kind: input, shape index: {}]
  %s7 = inlined_call_operand.vmem [shape: f32[2,128], index: 7, kind: output, shape index: {}]
  %s8 = sld [smem:[#allocation0]]
  $region38: #{forward.5} parent=0
    _
  %s10 = ssub.s32 1, %s8
  %s11 = scalar_select 0, %s10, %s8
  // Predicated region
  $region2: #{forward.5} parent=0 // pred_check
    _
  $region3: #{forward.5} parent=0 // pred_check_branch
    %13 = sbr.rel (0) target = $region5
  $region4: #{forward.5} parent=0 // pred_region
    _
  $region5: #{forward.5} parent=0 // pred_fallthru
    _
  // Predicated region
  $region6: #{forward.5} parent=0 // pred_check
    _
  $region7: #{forward.5} parent=0 // pred_check_branch
    %15 = sbr.rel (0) target = $region9
  $region8: #{forward.5} parent=0 // pred_region
    _
  $region9: #{forward.5} parent=0 // pred_fallthru
    _
  // Predicated region
  $region10: #{forward.5} parent=0 // pred_check
    _
  $region11: #{forward.5} parent=0 // pred_check_branch
    %17 = sbr.rel (0) target = $region13
  $region12: #{forward.5} parent=0 // pred_region
    _
  $region13: #{forward.5} parent=0 // pred_fallthru
    _
  // Predicated region
  $region14: #{forward.5} parent=0 // pred_check
    _
  $region15: #{forward.5} parent=0 // pred_check_branch
    %19 = sbr.rel (0) target = $region17
  $region16: #{forward.5} parent=0 // pred_region
    _
  $region17: #{forward.5} parent=0 // pred_fallthru
    _
  // Predicated region
  $region18: #{forward.5} parent=0 // pred_check
    _
  $region19: #{forward.5} parent=0 // pred_check_branch
    %21 = sbr.rel (0) target = $region21
  $region20: #{forward.5} parent=0 // pred_region
    _
  $region21: #{forward.5} parent=0 // pred_fallthru
    _
  // Predicated region
  $region22: #{forward.5} parent=0 // pred_check
    _
  $region23: #{forward.5} parent=0 // pred_check_branch
    %23 = sbr.rel (0) target = $region25
  $region24: #{forward.5} parent=0 // pred_region
    _
  $region25: #{forward.5} parent=0 // pred_fallthru
    _
  // Predicated region
  $region26: #{forward.5} parent=0 // pred_check
    _
  $region27: #{forward.5} parent=0 // pred_check_branch
    %25 = sbr.rel (0) target = $region29
  $region28: #{forward.5} parent=0 // pred_region
    _
  $region29: #{forward.5} parent=0 // pred_fallthru
    _
  %v27 = vld [vmem:[%s0] sm:$0x1f]
  %v28 = vld [vmem:[%s1] sm:$0xf]
  %v29 = vld [vmem:[%s1 + $0x4] sm:$0xf]
  %v30 = vld [vmem:[%s1 + $0x8] sm:$0xf]
  %v31 = vld [vmem:[%s1 + $0xc] sm:$0xf]
  %v32 = vld [vmem:[%s1 + $0x10] sm:$0xf]
  %v33 = vld [vmem:[%s1 + $0x14] sm:$0xf]
  %v34 = vld [vmem:[%s1 + $0x18] sm:$0xf]
  %v35 = vld [vmem:[%s1 + $0x1c] sm:$0xf]
  %v36 = vld [vmem:[%s1 + $0x20] sm:$0xf]
  %v37 = vld [vmem:[%s1 + $0x24] sm:$0xf]
  %v38 = vld [vmem:[%s1 + $0x28] sm:$0xf]
  %v39 = vld [vmem:[%s1 + $0x2c] sm:$0xf]
  %v40 = vld [vmem:[%s1 + $0x30] sm:$0xf]
  %v41 = vld [vmem:[%s1 + $0x34] sm:$0xf]
  %v42 = vld [vmem:[%s1 + $0x38] sm:$0xf]
  %v43 = vld [vmem:[%s1 + $0x3c] sm:$0xf]
  %v44 = vld [vmem:[%s1 + $0x40] sm:$0xf]
  %v45 = vld [vmem:[%s1 + $0x44] sm:$0xf]
  %v46 = vld [vmem:[%s1 + $0x48] sm:$0xf]
  %v47 = vld [vmem:[%s1 + $0x4c] sm:$0xf]
  %v48 = vld [vmem:[%s1 + $0x50] sm:$0xf]
  %v49 = vld [vmem:[%s1 + $0x54] sm:$0xf]
  %v50 = vld [vmem:[%s1 + $0x58] sm:$0xf]
  %v51 = vld [vmem:[%s1 + $0x5c] sm:$0xf]
  %v52 = vld [vmem:[%s1 + $0x60] sm:$0xf]
  %v53 = vld [vmem:[%s1 + $0x64] sm:$0xf]
  %v54 = vld [vmem:[%s1 + $0x68] sm:$0xf]
  %v55 = vld [vmem:[%s1 + $0x6c] sm:$0xf]
  %v56 = vld [vmem:[%s1 + $0x70] sm:$0xf]
  %v57 = vld [vmem:[%s1 + $0x74] sm:$0xf]
  %v58 = vld [vmem:[%s1 + $0x78] sm:$0xf]
  %v59 = vld [vmem:[%s1 + $0x7c] sm:$0xf]
  %v60 = vld [vmem:[%s1 + $0x80] sm:$0xf]
  %v61 = vld [vmem:[%s1 + $0x84] sm:$0xf]
  %v62 = vld [vmem:[%s1 + $0x88] sm:$0xf]
  %v63 = vld [vmem:[%s1 + $0x8c] sm:$0xf]
  %v64 = vld [vmem:[%s1 + $0x90] sm:$0xf]
  %v65 = vld [vmem:[%s1 + $0x94] sm:$0xf]
  %v66 = vld [vmem:[%s1 + $0x98] sm:$0xf]
  %v67 = vld [vmem:[%s1 + $0x9c] sm:$0xf]
  %v68 = vld [vmem:[%s1 + $0xa0] sm:$0xf]
  %v69 = vld [vmem:[%s1 + $0xa4] sm:$0xf]
  %v70 = vld [vmem:[%s1 + $0xa8] sm:$0xf]
  %v71 = vld [vmem:[%s1 + $0xac] sm:$0xf]
  %v72 = vld [vmem:[%s1 + $0xb0] sm:$0xf]
  %v73 = vld [vmem:[%s1 + $0xb4] sm:$0xf]
  %v74 = vld [vmem:[%s1 + $0xb8] sm:$0xf]
  %v75 = vld [vmem:[%s1 + $0xbc] sm:$0xf]
  %v76 = vld [vmem:[%s1 + $0xc0] sm:$0xf]
  %v77 = vld [vmem:[%s1 + $0xc4] sm:$0xf]
  %v78 = vld [vmem:[%s1 + $0xc8] sm:$0xf]
  %v79 = vld [vmem:[%s1 + $0xcc] sm:$0xf]
  %v80 = vld [vmem:[%s1 + $0xd0] sm:$0xf]
  %v81 = vld [vmem:[%s1 + $0xd4] sm:$0xf]
  %v82 = vld [vmem:[%s1 + $0xd8] sm:$0xf]
  %v83 = vld [vmem:[%s1 + $0xdc] sm:$0xf]
  %v84 = vld [vmem:[%s1 + $0xe0] sm:$0xf]
  %v85 = vld [vmem:[%s1 + $0xe4] sm:$0xf]
  %v86 = vld [vmem:[%s1 + $0xe8] sm:$0xf]
  %v87 = vld [vmem:[%s1 + $0xec] sm:$0xf]
  %v88 = vld [vmem:[%s1 + $0xf0] sm:$0xf]
  %v89 = vld [vmem:[%s1 + $0xf4] sm:$0xf]
  %v90 = vld [vmem:[%s1 + $0xf8] sm:$0xf]
  %v91 = vld [vmem:[%s1 + $0xfc] sm:$0xf]
  %v92 = vld [vmem:[%s1 + $0x100] sm:$0xf]
  %v93 = vld [vmem:[%s1 + $0x104] sm:$0xf]
  %v94 = vld [vmem:[%s1 + $0x108] sm:$0xf]
  %v95 = vld [vmem:[%s1 + $0x10c] sm:$0xf]
  %v96 = vld [vmem:[%s1 + $0x110] sm:$0xf]
  %v97 = vld [vmem:[%s1 + $0x114] sm:$0xf]
  %v98 = vld [vmem:[%s1 + $0x118] sm:$0xf]
  %v99 = vld [vmem:[%s1 + $0x11c] sm:$0xf]
  %v100 = vld [vmem:[%s1 + $0x120] sm:$0xf]
  %v101 = vld [vmem:[%s1 + $0x124] sm:$0xf]
  %v102 = vld [vmem:[%s1 + $0x128] sm:$0xf]
  %v103 = vld [vmem:[%s1 + $0x12c] sm:$0xf]
  %v104 = vld [vmem:[%s1 + $0x130] sm:$0xf]
  %v105 = vld [vmem:[%s1 + $0x134] sm:$0xf]
  %v106 = vld [vmem:[%s1 + $0x138] sm:$0xf]
  %v107 = vld [vmem:[%s1 + $0x13c] sm:$0xf]
  %v108 = vld [vmem:[%s2] sm:$0x1]
  %v110 = vperm.slane %v108, 0
  %113 = vst [vmem:[#allocation1] ss:$9 sm:$0xff] %v27
  %v114 = vld [vmem:[#allocation1] sm:$0xff]
  %v115 = vld [vmem:[#allocation1 + $0x9] sm:$0xff]
  %v116 = vld [vmem:[#allocation1 + $0x12] sm:$0xff]
  %v117 = vld [vmem:[#allocation1 + $0x1b] sm:$0xff]
  %v118 = vld [vmem:[#allocation1 + $0x24] sm:$0xff]
  %v204 = vunpack.c.l.b16 %v28
  %v205 = vunpack.c.l.b16 %v29
  %v206 = vunpack.c.l.b16 %v30
  %v207 = vunpack.c.l.b16 %v31
  %v208 = vunpack.c.l.b16 %v32
  %v209 = vunpack.c.l.b16 %v33
  %v210 = vunpack.c.l.b16 %v34
  %v211 = vunpack.c.l.b16 %v35
  %v212 = vunpack.c.l.b16 %v36
  %v213 = vunpack.c.l.b16 %v37
  %v214 = vunpack.c.l.b16 %v38
  %v215 = vunpack.c.l.b16 %v39
  %v216 = vunpack.c.l.b16 %v40
  %v217 = vunpack.c.l.b16 %v41
  %v218 = vunpack.c.l.b16 %v42
  %v219 = vunpack.c.l.b16 %v43
  %v220 = vunpack.c.l.b16 %v44
  %v221 = vunpack.c.l.b16 %v45
  %v222 = vunpack.c.l.b16 %v46
  %v223 = vunpack.c.l.b16 %v47
  %v224 = vunpack.c.l.b16 %v48
  %v225 = vunpack.c.l.b16 %v49
  %v226 = vunpack.c.l.b16 %v50
  %v227 = vunpack.c.l.b16 %v51
  %v228 = vunpack.c.l.b16 %v52
  %v229 = vunpack.c.l.b16 %v53
  %v230 = vunpack.c.l.b16 %v54
  %v231 = vunpack.c.l.b16 %v55
  %v232 = vunpack.c.l.b16 %v56
  %v233 = vunpack.c.l.b16 %v57
  %v234 = vunpack.c.l.b16 %v58
  %v235 = vunpack.c.l.b16 %v59
  %v236 = vunpack.c.l.b16 %v60
  %v237 = vunpack.c.l.b16 %v61
  %v238 = vunpack.c.l.b16 %v62
  %v239 = vunpack.c.l.b16 %v63
  %v240 = vunpack.c.l.b16 %v64
  %v241 = vunpack.c.l.b16 %v65
  %v242 = vunpack.c.l.b16 %v66
  %v243 = vunpack.c.l.b16 %v67
  %v244 = vunpack.c.l.b16 %v68
  %v245 = vunpack.c.l.b16 %v69
  %v246 = vunpack.c.l.b16 %v70
  %v247 = vunpack.c.l.b16 %v71
  %v248 = vunpack.c.l.b16 %v72
  %v249 = vunpack.c.l.b16 %v73
  %v250 = vunpack.c.l.b16 %v74
  %v251 = vunpack.c.l.b16 %v75
  %v252 = vunpack.c.l.b16 %v76
  %v253 = vunpack.c.l.b16 %v77
  %v254 = vunpack.c.l.b16 %v78
  %v255 = vunpack.c.l.b16 %v79
  %v256 = vunpack.c.l.b16 %v80
  %v257 = vunpack.c.l.b16 %v81
  %v258 = vunpack.c.l.b16 %v82
  %v259 = vunpack.c.l.b16 %v83
  %v260 = vunpack.c.l.b16 %v84
  %v261 = vunpack.c.l.b16 %v85
  %v262 = vunpack.c.l.b16 %v86
  %v263 = vunpack.c.l.b16 %v87
  %v264 = vunpack.c.l.b16 %v88
  %v265 = vunpack.c.l.b16 %v89
  %v266 = vunpack.c.l.b16 %v90
  %v267 = vunpack.c.l.b16 %v91
  %v268 = vunpack.c.l.b16 %v92
  %v269 = vunpack.c.l.b16 %v93
  %v270 = vunpack.c.l.b16 %v94
  %v271 = vunpack.c.l.b16 %v95
  %v272 = vunpack.c.l.b16 %v96
  %v273 = vunpack.c.l.b16 %v97
  %v274 = vunpack.c.l.b16 %v98
  %v275 = vunpack.c.l.b16 %v99
  %v276 = vunpack.c.l.b16 %v100
  %v277 = vunpack.c.l.b16 %v101
  %v278 = vunpack.c.l.b16 %v102
  %v279 = vunpack.c.l.b16 %v103
  %v280 = vunpack.c.l.b16 %v104
  %v281 = vunpack.c.l.b16 %v105
  %v282 = vunpack.c.l.b16 %v106
  %v283 = vunpack.c.l.b16 %v107
  %v284 = vpack.c.b16 %v205, %v204
  %v285 = vpack.c.b16 %v207, %v206
  %v286 = vpack.c.b16 %v209, %v208
  %v287 = vpack.c.b16 %v211, %v210
  %v288 = vpack.c.b16 %v213, %v212
  %v289 = vpack.c.b16 %v215, %v214
  %v290 = vpack.c.b16 %v217, %v216
  %v291 = vpack.c.b16 %v219, %v218
  %v292 = vpack.c.b16 %v221, %v220
  %v293 = vpack.c.b16 %v223, %v222
  %v294 = vpack.c.b16 %v225, %v224
  %v295 = vpack.c.b16 %v227, %v226
  %v296 = vpack.c.b16 %v229, %v228
  %v297 = vpack.c.b16 %v231, %v230
  %v298 = vpack.c.b16 %v233, %v232
  %v299 = vpack.c.b16 %v235, %v234
  %v300 = vpack.c.b16 %v237, %v236
  %v301 = vpack.c.b16 %v239, %v238
  %v302 = vpack.c.b16 %v241, %v240
  %v303 = vpack.c.b16 %v243, %v242
  %v304 = vpack.c.b16 %v245, %v244
  %v305 = vpack.c.b16 %v247, %v246
  %v306 = vpack.c.b16 %v249, %v248
  %v307 = vpack.c.b16 %v251, %v250
  %v308 = vpack.c.b16 %v253, %v252
  %v309 = vpack.c.b16 %v255, %v254
  %v310 = vpack.c.b16 %v257, %v256
  %v311 = vpack.c.b16 %v259, %v258
  %v312 = vpack.c.b16 %v261, %v260
  %v313 = vpack.c.b16 %v263, %v262
  %v314 = vpack.c.b16 %v265, %v264
  %v315 = vpack.c.b16 %v267, %v266
  %v316 = vpack.c.b16 %v269, %v268
  %v317 = vpack.c.b16 %v271, %v270
  %v318 = vpack.c.b16 %v273, %v272
  %v319 = vpack.c.b16 %v275, %v274
  %v320 = vpack.c.b16 %v277, %v276
  %v321 = vpack.c.b16 %v279, %v278
  %v322 = vpack.c.b16 %v281, %v280
  %v323 = vpack.c.b16 %v283, %v282
  %364 = vmatpush.bf16.msra.mxu0 %v291
  %365 = vmatpush.bf16.msra.mxu0 %v290
  %366 = vmatpush.bf16.msra.mxu0 %v289
  %367 = vmatpush.bf16.msra.mxu0 %v288
  %368 = vmatpush.bf16.msra.mxu0 %v287
  %369 = vmatpush.bf16.msra.mxu0 %v286
  %370 = vmatpush.bf16.msra.mxu0 %v285
  %371 = vmatpush.bf16.msra.mxu0 %v284
  %372 = vmatmul.bf16.gmra.mxu0 %v114
  %v373 = vpop.f32.mrf.mxu0
  %v374 = vadd.f32 %v110, %v373
  %v375 = vpop.f32.mrf.mxu0
  %376 = vdwg.mxu0
  %377 = vmatpush.bf16.msra.mxu0 %v299
  %378 = vmatpush.bf16.msra.mxu0 %v298
  %379 = vmatpush.bf16.msra.mxu0 %v297
  %380 = vmatpush.bf16.msra.mxu0 %v296
  %381 = vmatpush.bf16.msra.mxu0 %v295
  %382 = vmatpush.bf16.msra.mxu0 %v294
  %383 = vmatpush.bf16.msra.mxu0 %v293
  %384 = vmatpush.bf16.msra.mxu0 %v292
  %385 = vmatmul.bf16.gmra.mxu0 %v115
  %v386 = vpop.f32.mrf.mxu0
  %v387 = vadd.f32 %v374, %v386
  %v388 = vpop.f32.mrf.mxu0
  %389 = vdwg.mxu0
  %390 = vmatpush.bf16.msra.mxu0 %v307
  %391 = vmatpush.bf16.msra.mxu0 %v306
  %392 = vmatpush.bf16.msra.mxu0 %v305
  %393 = vmatpush.bf16.msra.mxu0 %v304
  %394 = vmatpush.bf16.msra.mxu0 %v303
  %395 = vmatpush.bf16.msra.mxu0 %v302
  %396 = vmatpush.bf16.msra.mxu0 %v301
  %397 = vmatpush.bf16.msra.mxu0 %v300
  %398 = vmatmul.bf16.gmra.mxu0 %v116
  %v399 = vpop.f32.mrf.mxu0
  %v400 = vadd.f32 %v387, %v399
  %v401 = vpop.f32.mrf.mxu0
  %402 = vdwg.mxu0
  %403 = vmatpush.bf16.msra.mxu0 %v315
  %404 = vmatpush.bf16.msra.mxu0 %v314
  %405 = vmatpush.bf16.msra.mxu0 %v313
  %406 = vmatpush.bf16.msra.mxu0 %v312
  %407 = vmatpush.bf16.msra.mxu0 %v311
  %408 = vmatpush.bf16.msra.mxu0 %v310
  %409 = vmatpush.bf16.msra.mxu0 %v309
  %410 = vmatpush.bf16.msra.mxu0 %v308
  %411 = vmatmul.bf16.gmra.mxu0 %v117
  %v412 = vpop.f32.mrf.mxu0
  %v413 = vadd.f32 %v400, %v412
  %v414 = vpop.f32.mrf.mxu0
  %415 = vdwg.mxu0
  %416 = vmatpush.bf16.msra.mxu0 %v323
  %417 = vmatpush.bf16.msra.mxu0 %v322
  %418 = vmatpush.bf16.msra.mxu0 %v321
  %419 = vmatpush.bf16.msra.mxu0 %v320
  %420 = vmatpush.bf16.msra.mxu0 %v319
  %421 = vmatpush.bf16.msra.mxu0 %v318
  %422 = vmatpush.bf16.msra.mxu0 %v317
  %423 = vmatpush.bf16.msra.mxu0 %v316
  %424 = vmatmul.bf16.gmra.mxu0 %v118
  %v425 = vpop.f32.mrf.mxu0
  %v426 = vadd.f32 %v413, %v425
  %v427 = vpop.f32.mrf.mxu0
  %428 = vdwg.mxu0
  %v429 = vmax.f32 %v426, 0.0
  %v430 = vpack.c.bf16 %v429, %v429
  %v431 = vld [vmem:[%s3] sm:$0xff]
  %v432 = vld [vmem:[%s3 + $0x8] sm:$0xff]
  %v433 = vld [vmem:[%s3 + $0x10] sm:$0xff]
  %v434 = vld [vmem:[%s3 + $0x18] sm:$0xff]
  %v435 = vld [vmem:[%s3 + $0x20] sm:$0xff]
  %v436 = vld [vmem:[%s3 + $0x28] sm:$0xff]
  %v437 = vld [vmem:[%s3 + $0x30] sm:$0xff]
  %v438 = vld [vmem:[%s3 + $0x38] sm:$0xff]
  %v439 = vld [vmem:[%s3 + $0x40] sm:$0xff]
  %v440 = vld [vmem:[%s3 + $0x48] sm:$0xff]
  %v441 = vld [vmem:[%s3 + $0x50] sm:$0xff]
  %v442 = vld [vmem:[%s3 + $0x58] sm:$0xff]
  %v443 = vld [vmem:[%s3 + $0x60] sm:$0xff]
  %v444 = vld [vmem:[%s3 + $0x68] sm:$0xff]
  %v445 = vld [vmem:[%s3 + $0x70] sm:$0xff]
  %v446 = vld [vmem:[%s3 + $0x78] sm:$0xff]
  %v447 = vld [vmem:[%s4] sm:$0xf]
  %v449 = vperm.slane %v447, 0
  %v450 = vperm.slane %v447, 1
  %v451 = vperm.slane %v447, 2
  %v452 = vperm.slane %v447, 3
  %v473 = vunpack.c.l.b16 %v431
  %v474 = vunpack.c.h.b16 %v431
  %v475 = vunpack.c.l.b16 %v432
  %v476 = vunpack.c.h.b16 %v432
  %v477 = vunpack.c.l.b16 %v433
  %v478 = vunpack.c.h.b16 %v433
  %v479 = vunpack.c.l.b16 %v434
  %v480 = vunpack.c.h.b16 %v434
  %v481 = vunpack.c.l.b16 %v435
  %v482 = vunpack.c.h.b16 %v435
  %v483 = vunpack.c.l.b16 %v436
  %v484 = vunpack.c.h.b16 %v436
  %v485 = vunpack.c.l.b16 %v437
  %v486 = vunpack.c.h.b16 %v437
  %v487 = vunpack.c.l.b16 %v438
  %v488 = vunpack.c.h.b16 %v438
  %v489 = vunpack.c.l.b16 %v439
  %v490 = vunpack.c.h.b16 %v439
  %v491 = vunpack.c.l.b16 %v440
  %v492 = vunpack.c.h.b16 %v440
  %v493 = vunpack.c.l.b16 %v441
  %v494 = vunpack.c.h.b16 %v441
  %v495 = vunpack.c.l.b16 %v442
  %v496 = vunpack.c.h.b16 %v442
  %v497 = vunpack.c.l.b16 %v443
  %v498 = vunpack.c.h.b16 %v443
  %v499 = vunpack.c.l.b16 %v444
  %v500 = vunpack.c.h.b16 %v444
  %v501 = vunpack.c.l.b16 %v445
  %v502 = vunpack.c.h.b16 %v445
  %v503 = vunpack.c.l.b16 %v446
  %v504 = vunpack.c.h.b16 %v446
  %v505 = vpack.c.b16 %v477, %v473
  %v506 = vpack.c.b16 %v478, %v474
  %v507 = vpack.c.b16 %v479, %v475
  %v508 = vpack.c.b16 %v480, %v476
  %v509 = vpack.c.b16 %v485, %v481
  %v510 = vpack.c.b16 %v486, %v482
  %v511 = vpack.c.b16 %v487, %v483
  %v512 = vpack.c.b16 %v488, %v484
  %v513 = vpack.c.b16 %v493, %v489
  %v514 = vpack.c.b16 %v494, %v490
  %v515 = vpack.c.b16 %v495, %v491
  %v516 = vpack.c.b16 %v496, %v492
  %v517 = vpack.c.b16 %v501, %v497
  %v518 = vpack.c.b16 %v502, %v498
  %v519 = vpack.c.b16 %v503, %v499
  %v520 = vpack.c.b16 %v504, %v500
  %vm537 = vcmask 523264
  %v539 = vsel %vm537, %v430, 0
  %541 = vmatpush.bf16.msra.mxu0 0
  %542 = vmatpush.bf16.msra.mxu0 0
  %543 = vmatpush.bf16.msra.mxu0 0
  %544 = vmatpush.bf16.msra.mxu0 0
  %545 = vmatpush.bf16.msra.mxu0 %v517
  %546 = vmatpush.bf16.msra.mxu0 %v513
  %547 = vmatpush.bf16.msra.mxu0 %v509
  %548 = vmatpush.bf16.msra.mxu0 %v505
  %549 = vmatmul.bf16.gmra.mxu0 %v539
  %v550 = vpop.f32.mrf.mxu0
  %v551 = vadd.f32 %v449, %v550
  %v552 = vpop.f32.mrf.mxu0
  %553 = vdwg.mxu0
  %554 = vmatpush.bf16.msra.mxu0 0
  %555 = vmatpush.bf16.msra.mxu0 0
  %556 = vmatpush.bf16.msra.mxu0 0
  %557 = vmatpush.bf16.msra.mxu0 0
  %558 = vmatpush.bf16.msra.mxu0 %v518
  %559 = vmatpush.bf16.msra.mxu0 %v514
  %560 = vmatpush.bf16.msra.mxu0 %v510
  %561 = vmatpush.bf16.msra.mxu0 %v506
  %562 = vmatmul.bf16.gmra.mxu0 %v539
  %v563 = vpop.f32.mrf.mxu0
  %v564 = vadd.f32 %v450, %v563
  %v565 = vpop.f32.mrf.mxu0
  %566 = vdwg.mxu0
  %567 = vmatpush.bf16.msra.mxu0 0
  %568 = vmatpush.bf16.msra.mxu0 0
  %569 = vmatpush.bf16.msra.mxu0 0
  %570 = vmatpush.bf16.msra.mxu0 0
  %571 = vmatpush.bf16.msra.mxu0 %v519
  %572 = vmatpush.bf16.msra.mxu0 %v515
  %573 = vmatpush.bf16.msra.mxu0 %v511
  %574 = vmatpush.bf16.msra.mxu0 %v507
  %575 = vmatmul.bf16.gmra.mxu0 %v539
  %v576 = vpop.f32.mrf.mxu0
  %v577 = vadd.f32 %v451, %v576
  %v578 = vpop.f32.mrf.mxu0
  %579 = vdwg.mxu0
  %580 = vmatpush.bf16.msra.mxu0 0
  %581 = vmatpush.bf16.msra.mxu0 0
  %582 = vmatpush.bf16.msra.mxu0 0
  %583 = vmatpush.bf16.msra.mxu0 0
  %584 = vmatpush.bf16.msra.mxu0 %v520
  %585 = vmatpush.bf16.msra.mxu0 %v516
  %586 = vmatpush.bf16.msra.mxu0 %v512
  %587 = vmatpush.bf16.msra.mxu0 %v508
  %588 = vmatmul.bf16.gmra.mxu0 %v539
  %v589 = vpop.f32.mrf.mxu0
  %v590 = vadd.f32 %v452, %v589
  %v591 = vpop.f32.mrf.mxu0
  %592 = vdwg.mxu0
  %v593 = vmax.f32 %v551, 0.0
  %v594 = vmax.f32 %v564, 0.0
  %v595 = vmax.f32 %v577, 0.0
  %v596 = vmax.f32 %v590, 0.0
  %v597 = vpack.c.bf16 %v593, %v593
  %v598 = vpack.c.bf16 %v594, %v594
  %v599 = vpack.c.bf16 %v595, %v595
  %v600 = vpack.c.bf16 %v596, %v596
  %v601 = vld [vmem:[%s5] sm:$0xf]
  %v602 = vld [vmem:[%s5 + $0x4] sm:$0xf]
  %v603 = vld [vmem:[%s5 + $0x8] sm:$0xf]
  %v604 = vld [vmem:[%s5 + $0xc] sm:$0xf]
  %v605 = vld [vmem:[%s5 + $0x10] sm:$0xf]
  %v606 = vld [vmem:[%s5 + $0x14] sm:$0xf]
  %v607 = vld [vmem:[%s5 + $0x18] sm:$0xf]
  %v608 = vld [vmem:[%s5 + $0x1c] sm:$0xf]
  %v609 = vld [vmem:[%s5 + $0x20] sm:$0xf]
  %v610 = vld [vmem:[%s5 + $0x24] sm:$0xf]
  %v611 = vld [vmem:[%s5 + $0x28] sm:$0xf]
  %v612 = vld [vmem:[%s5 + $0x2c] sm:$0xf]
  %v613 = vld [vmem:[%s5 + $0x30] sm:$0xf]
  %v614 = vld [vmem:[%s5 + $0x34] sm:$0xf]
  %v615 = vld [vmem:[%s5 + $0x38] sm:$0xf]
  %v616 = vld [vmem:[%s5 + $0x3c] sm:$0xf]
  %v617 = vld [vmem:[%s5 + $0x40] sm:$0xf]
  %v618 = vld [vmem:[%s5 + $0x44] sm:$0xf]
  %v619 = vld [vmem:[%s5 + $0x48] sm:$0xf]
  %v620 = vld [vmem:[%s5 + $0x4c] sm:$0xf]
  %v621 = vld [vmem:[%s5 + $0x50] sm:$0xf]
  %v622 = vld [vmem:[%s5 + $0x54] sm:$0xf]
  %v623 = vld [vmem:[%s5 + $0x58] sm:$0xf]
  %v624 = vld [vmem:[%s5 + $0x5c] sm:$0xf]
  %v625 = vld [vmem:[%s5 + $0x60] sm:$0xf]
  %v626 = vld [vmem:[%s5 + $0x64] sm:$0xf]
  %v627 = vld [vmem:[%s5 + $0x68] sm:$0xf]
  %v628 = vld [vmem:[%s5 + $0x6c] sm:$0xf]
  %v629 = vld [vmem:[%s5 + $0x70] sm:$0xf]
  %v630 = vld [vmem:[%s5 + $0x74] sm:$0xf]
  %v631 = vld [vmem:[%s5 + $0x78] sm:$0xf]
  %v632 = vld [vmem:[%s5 + $0x7c] sm:$0xf]
  %v633 = vld [vmem:[%s5 + $0x80] sm:$0xf]
  %v634 = vld [vmem:[%s5 + $0x84] sm:$0xf]
  %v635 = vld [vmem:[%s5 + $0x88] sm:$0xf]
  %v636 = vld [vmem:[%s5 + $0x8c] sm:$0xf]
  %v637 = vld [vmem:[%s5 + $0x90] sm:$0xf]
  %v638 = vld [vmem:[%s5 + $0x94] sm:$0xf]
  %v639 = vld [vmem:[%s5 + $0x98] sm:$0xf]
  %v640 = vld [vmem:[%s5 + $0x9c] sm:$0xf]
  %v641 = vld [vmem:[%s5 + $0xa0] sm:$0xf]
  %v642 = vld [vmem:[%s5 + $0xa4] sm:$0xf]
  %v643 = vld [vmem:[%s5 + $0xa8] sm:$0xf]
  %v644 = vld [vmem:[%s5 + $0xac] sm:$0xf]
  %v645 = vld [vmem:[%s5 + $0xb0] sm:$0xf]
  %v646 = vld [vmem:[%s5 + $0xb4] sm:$0xf]
  %v647 = vld [vmem:[%s5 + $0xb8] sm:$0xf]
  %v648 = vld [vmem:[%s5 + $0xbc] sm:$0xf]
  %v649 = vld [vmem:[%s5 + $0xc0] sm:$0xf]
  %v650 = vld [vmem:[%s5 + $0xc4] sm:$0xf]
  %v651 = vld [vmem:[%s5 + $0xc8] sm:$0xf]
  %v652 = vld [vmem:[%s5 + $0xcc] sm:$0xf]
  %v653 = vld [vmem:[%s5 + $0xd0] sm:$0xf]
  %v654 = vld [vmem:[%s5 + $0xd4] sm:$0xf]
  %v655 = vld [vmem:[%s5 + $0xd8] sm:$0xf]
  %v656 = vld [vmem:[%s5 + $0xdc] sm:$0xf]
  %v657 = vld [vmem:[%s5 + $0xe0] sm:$0xf]
  %v658 = vld [vmem:[%s5 + $0xe4] sm:$0xf]
  %v659 = vld [vmem:[%s5 + $0xe8] sm:$0xf]
  %v660 = vld [vmem:[%s5 + $0xec] sm:$0xf]
  %v661 = vld [vmem:[%s5 + $0xf0] sm:$0xf]
  %v662 = vld [vmem:[%s5 + $0xf4] sm:$0xf]
  %v663 = vld [vmem:[%s5 + $0xf8] sm:$0xf]
  %v664 = vld [vmem:[%s5 + $0xfc] sm:$0xf]
  %v665 = vld [vmem:[%s6] sm:$0x1]
  %v667 = vperm.slane %v665, 0
  %v733 = vunpack.c.l.b16 %v601
  %v734 = vunpack.c.l.b16 %v602
  %v735 = vunpack.c.l.b16 %v603
  %v736 = vunpack.c.l.b16 %v604
  %v737 = vunpack.c.l.b16 %v605
  %v738 = vunpack.c.l.b16 %v606
  %v739 = vunpack.c.l.b16 %v607
  %v740 = vunpack.c.l.b16 %v608
  %v741 = vunpack.c.l.b16 %v609
  %v742 = vunpack.c.l.b16 %v610
  %v743 = vunpack.c.l.b16 %v611
  %v744 = vunpack.c.l.b16 %v612
  %v745 = vunpack.c.l.b16 %v613
  %v746 = vunpack.c.l.b16 %v614
  %v747 = vunpack.c.l.b16 %v615
  %v748 = vunpack.c.l.b16 %v616
  %v749 = vunpack.c.l.b16 %v617
  %v750 = vunpack.c.l.b16 %v618
  %v751 = vunpack.c.l.b16 %v619
  %v752 = vunpack.c.l.b16 %v620
  %v753 = vunpack.c.l.b16 %v621
  %v754 = vunpack.c.l.b16 %v622
  %v755 = vunpack.c.l.b16 %v623
  %v756 = vunpack.c.l.b16 %v624
  %v757 = vunpack.c.l.b16 %v625
  %v758 = vunpack.c.l.b16 %v626
  %v759 = vunpack.c.l.b16 %v627
  %v760 = vunpack.c.l.b16 %v628
  %v761 = vunpack.c.l.b16 %v629
  %v762 = vunpack.c.l.b16 %v630
  %v763 = vunpack.c.l.b16 %v631
  %v764 = vunpack.c.l.b16 %v632
  %v765 = vunpack.c.l.b16 %v633
  %v766 = vunpack.c.l.b16 %v634
  %v767 = vunpack.c.l.b16 %v635
  %v768 = vunpack.c.l.b16 %v636
  %v769 = vunpack.c.l.b16 %v637
  %v770 = vunpack.c.l.b16 %v638
  %v771 = vunpack.c.l.b16 %v639
  %v772 = vunpack.c.l.b16 %v640
  %v773 = vunpack.c.l.b16 %v641
  %v774 = vunpack.c.l.b16 %v642
  %v775 = vunpack.c.l.b16 %v643
  %v776 = vunpack.c.l.b16 %v644
  %v777 = vunpack.c.l.b16 %v645
  %v778 = vunpack.c.l.b16 %v646
  %v779 = vunpack.c.l.b16 %v647
  %v780 = vunpack.c.l.b16 %v648
  %v781 = vunpack.c.l.b16 %v649
  %v782 = vunpack.c.l.b16 %v650
  %v783 = vunpack.c.l.b16 %v651
  %v784 = vunpack.c.l.b16 %v652
  %v785 = vunpack.c.l.b16 %v653
  %v786 = vunpack.c.l.b16 %v654
  %v787 = vunpack.c.l.b16 %v655
  %v788 = vunpack.c.l.b16 %v656
  %v789 = vunpack.c.l.b16 %v657
  %v790 = vunpack.c.l.b16 %v658
  %v791 = vunpack.c.l.b16 %v659
  %v792 = vunpack.c.l.b16 %v660
  %v793 = vunpack.c.l.b16 %v661
  %v794 = vunpack.c.l.b16 %v662
  %v795 = vunpack.c.l.b16 %v663
  %v796 = vunpack.c.l.b16 %v664
  %v797 = vpack.c.b16 %v734, %v733
  %v798 = vpack.c.b16 %v736, %v735
  %v799 = vpack.c.b16 %v738, %v737
  %v800 = vpack.c.b16 %v740, %v739
  %v801 = vpack.c.b16 %v742, %v741
  %v802 = vpack.c.b16 %v744, %v743
  %v803 = vpack.c.b16 %v746, %v745
  %v804 = vpack.c.b16 %v748, %v747
  %v805 = vpack.c.b16 %v750, %v749
  %v806 = vpack.c.b16 %v752, %v751
  %v807 = vpack.c.b16 %v754, %v753
  %v808 = vpack.c.b16 %v756, %v755
  %v809 = vpack.c.b16 %v758, %v757
  %v810 = vpack.c.b16 %v760, %v759
  %v811 = vpack.c.b16 %v762, %v761
  %v812 = vpack.c.b16 %v764, %v763
  %v813 = vpack.c.b16 %v766, %v765
  %v814 = vpack.c.b16 %v768, %v767
  %v815 = vpack.c.b16 %v770, %v769
  %v816 = vpack.c.b16 %v772, %v771
  %v817 = vpack.c.b16 %v774, %v773
  %v818 = vpack.c.b16 %v776, %v775
  %v819 = vpack.c.b16 %v778, %v777
  %v820 = vpack.c.b16 %v780, %v779
  %v821 = vpack.c.b16 %v782, %v781
  %v822 = vpack.c.b16 %v784, %v783
  %v823 = vpack.c.b16 %v786, %v785
  %v824 = vpack.c.b16 %v788, %v787
  %v825 = vpack.c.b16 %v790, %v789
  %v826 = vpack.c.b16 %v792, %v791
  %v827 = vpack.c.b16 %v794, %v793
  %v828 = vpack.c.b16 %v796, %v795
  %861 = vmatpush.bf16.msra.mxu0 %v804
  %862 = vmatpush.bf16.msra.mxu0 %v803
  %863 = vmatpush.bf16.msra.mxu0 %v802
  %864 = vmatpush.bf16.msra.mxu0 %v801
  %865 = vmatpush.bf16.msra.mxu0 %v800
  %866 = vmatpush.bf16.msra.mxu0 %v799
  %867 = vmatpush.bf16.msra.mxu0 %v798
  %868 = vmatpush.bf16.msra.mxu0 %v797
  %869 = vmatmul.bf16.gmra.mxu0 %v597
  %v870 = vpop.f32.mrf.mxu0
  %v871 = vadd.f32 %v667, %v870
  %v872 = vpop.f32.mrf.mxu0
  %873 = vdwg.mxu0
  %874 = vmatpush.bf16.msra.mxu0 %v812
  %875 = vmatpush.bf16.msra.mxu0 %v811
  %876 = vmatpush.bf16.msra.mxu0 %v810
  %877 = vmatpush.bf16.msra.mxu0 %v809
  %878 = vmatpush.bf16.msra.mxu0 %v808
  %879 = vmatpush.bf16.msra.mxu0 %v807
  %880 = vmatpush.bf16.msra.mxu0 %v806
  %881 = vmatpush.bf16.msra.mxu0 %v805
  %882 = vmatmul.bf16.gmra.mxu0 %v598
  %v883 = vpop.f32.mrf.mxu0
  %v884 = vadd.f32 %v871, %v883
  %v885 = vpop.f32.mrf.mxu0
  %886 = vdwg.mxu0
  %887 = vmatpush.bf16.msra.mxu0 %v820
  %888 = vmatpush.bf16.msra.mxu0 %v819
  %889 = vmatpush.bf16.msra.mxu0 %v818
  %890 = vmatpush.bf16.msra.mxu0 %v817
  %891 = vmatpush.bf16.msra.mxu0 %v816
  %892 = vmatpush.bf16.msra.mxu0 %v815
  %893 = vmatpush.bf16.msra.mxu0 %v814
  %894 = vmatpush.bf16.msra.mxu0 %v813
  %895 = vmatmul.bf16.gmra.mxu0 %v599
  %v896 = vpop.f32.mrf.mxu0
  %v897 = vadd.f32 %v884, %v896
  %v898 = vpop.f32.mrf.mxu0
  %899 = vdwg.mxu0
  %900 = vmatpush.bf16.msra.mxu0 %v828
  %901 = vmatpush.bf16.msra.mxu0 %v827
  %902 = vmatpush.bf16.msra.mxu0 %v826
  %903 = vmatpush.bf16.msra.mxu0 %v825
  %904 = vmatpush.bf16.msra.mxu0 %v824
  %905 = vmatpush.bf16.msra.mxu0 %v823
  %906 = vmatpush.bf16.msra.mxu0 %v822
  %907 = vmatpush.bf16.msra.mxu0 %v821
  %908 = vmatmul.bf16.gmra.mxu0 %v600
  %v909 = vpop.f32.mrf.mxu0
  %v910 = vadd.f32 %v897, %v909
  %v911 = vpop.f32.mrf.mxu0
  %912 = vdwg.mxu0
  %913 = vst [vmem:[%s7] sm:$0x3] %v910
  // Predicated region
  $region30: #{forward.5} parent=0 // pred_check
    _
  $region31: #{forward.5} parent=0 // pred_check_branch
    %915 = sbr.rel (0) target = $region33
  $region32: #{forward.5} parent=0 // pred_region
    _
  $region33: #{forward.5} parent=0 // pred_fallthru
    _
  // Predicated region
  $region34: #{forward.5} parent=0 // pred_check
    _
  $region35: #{forward.5} parent=0 // pred_check_branch
    %917 = sbr.rel (0) target = $region37
  $region36: #{forward.5} parent=0 // pred_region
    _
  $region37: #{forward.5} parent=0 // pred_fallthru
    _

</llo_original>
